<compile_context>
chip_gen: v7x
topology: tpu7x:2x2x1
jax: 0.10.0
libtpu: 0.0.40
codegen_flags: <defaults>
</compile_context>

<pallas_src>
import functools

import jax
import jax.numpy as jnp
import numpy as np
from jax import lax
from jax.experimental import pallas as pl
from jax.experimental.pallas import tpu as pltpu

_VMEM_LIMIT = 48 * 1024 * 1024


# ------------------------------ small helpers ------------------------------ #

def _round_up(x, m):
    return (x + m - 1) // m * m


def _pad2d(a, rows, cols):
    r, c = a.shape
    if r == rows and c == cols:
        return a
    return jnp.pad(a, ((0, rows - r), (0, cols - c)))


def _choose_m_tile(M, max_tile=256):
    m8 = _round_up(M, 8)
    tm = min(max_tile, m8)
    Mp = _round_up(m8, tm)
    return tm, Mp


# ------------------------------ Pallas kernels ----------------------------- #

def _mm_stats_kernel(x_ref, w_ref, y_ref, s_ref, ss_ref):
    """bf16 matmul -> f32 tile + per-tile partial sum / sum-of-squares."""
    y = jnp.dot(x_ref[...], w_ref[...], preferred_element_type=jnp.float32)
    y_ref[...] = y
    s = jnp.sum(y, axis=0, keepdims=True)           # (1, Cp)
    ss = jnp.sum(y * y, axis=0, keepdims=True)      # (1, Cp)
    s_ref[...] = jnp.broadcast_to(s, s_ref.shape)   # (8, Cp) sublane-dense
    ss_ref[...] = jnp.broadcast_to(ss, ss_ref.shape)


def _make_bn_apply_kernel(relu: bool, has_residual: bool):
    """y*scale + shift (+ residual) (+ relu) on one (tm, Cp) tile."""
    if has_residual:
        def kernel(y_ref, sc_ref, sh_ref, r_ref, o_ref):
            y = y_ref[...] * sc_ref[...] + sh_ref[...] + r_ref[...]
            if relu:
                y = jnp.maximum(y, 0.0)
            o_ref[...] = y.astype(o_ref.dtype)
    else:
        def kernel(y_ref, sc_ref, sh_ref, o_ref):
            y = y_ref[...] * sc_ref[...] + sh_ref[...]
            if relu:
                y = jnp.maximum(y, 0.0)
            o_ref[...] = y.astype(o_ref.dtype)
    return kernel


# -------------------------- fused conv + BN (+res) ------------------------- #

def conv_bn_act(x2d, w2d, gamma, beta, *, eps, relu, residual=None):
    """relu?( bn( x2d @ w2d ) [+ residual] ) with batch-statistics BN.

    x2d: (M, K) float; w2d: (K, Cout); gamma/beta: (Cout,);
    residual: optional (M, Cout) f32.  Returns (M, Cout) f32.
    """
    M, K = x2d.shape
    Cout = w2d.shape[1]
    Cp = _round_up(max(Cout, 128), 128)        # lane-dense channel padding
    tm, Mp = _choose_m_tile(M)
    nt = Mp // tm

    xb = _pad2d(x2d.astype(jnp.bfloat16), Mp, K)
    wb = _pad2d(w2d.astype(jnp.bfloat16), K, Cp)

    # ---- pass 1: tiled matmul + partial statistics ----
    y, psum, psq = pl.pallas_call(
        _mm_stats_kernel,
        out_shape=(
            jax.ShapeDtypeStruct((Mp, Cp), jnp.float32),
            jax.ShapeDtypeStruct((nt * 8, Cp), jnp.float32),
            jax.ShapeDtypeStruct((nt * 8, Cp), jnp.float32),
        ),
        grid=(nt,),
        in_specs=[
            pl.BlockSpec((tm, K), lambda i: (i, 0)),
            pl.BlockSpec((K, Cp), lambda i: (0, 0)),
        ],
        out_specs=(
            pl.BlockSpec((tm, Cp), lambda i: (i, 0)),
            pl.BlockSpec((8, Cp), lambda i: (i, 0)),
            pl.BlockSpec((8, Cp), lambda i: (i, 0)),
        ),
        compiler_params=pltpu.CompilerParams(
            dimension_semantics=("parallel",),
            vmem_limit_bytes=_VMEM_LIMIT),
    )(xb, wb)

    # ---- finalize batch stats + fold BN affine (tiny (Cp,) vectors, XLA) ----
    s = psum.reshape(nt, 8, Cp)[:, 0, :].sum(axis=0)
    ss = psq.reshape(nt, 8, Cp)[:, 0, :].sum(axis=0)
    mean = s / M                                            # padded rows are 0
    var = jnp.maximum(ss / M - mean * mean, 0.0)            # biased variance
    g = jnp.pad(gamma.astype(jnp.float32), (0, Cp - Cout))
    b = jnp.pad(beta.astype(jnp.float32), (0, Cp - Cout))
    scale = g * lax.rsqrt(var + eps)
    shift = b - mean * scale

    # ---- pass 2: normalize (+ residual) (+ relu) ----
    has_res = residual is not None
    operands = [y, scale[None, :], shift[None, :]]
    in_specs = [
        pl.BlockSpec((tm, Cp), lambda i: (i, 0)),
        pl.BlockSpec((1, Cp), lambda i: (0, 0)),
        pl.BlockSpec((1, Cp), lambda i: (0, 0)),
    ]
    if has_res:
        operands.append(_pad2d(residual.astype(jnp.float32), Mp, Cp))
        in_specs.append(pl.BlockSpec((tm, Cp), lambda i: (i, 0)))

    out = pl.pallas_call(
        _make_bn_apply_kernel(relu, has_res),
        out_shape=jax.ShapeDtypeStruct((Mp, Cp), jnp.float32),
        grid=(nt,),
        in_specs=in_specs,
        out_specs=pl.BlockSpec((tm, Cp), lambda i: (i, 0)),
        compiler_params=pltpu.CompilerParams(
            dimension_semantics=("parallel",),
            vmem_limit_bytes=_VMEM_LIMIT),
    )(*operands)

    return out[:M, :Cout]


# ------------------------------ JAX glue ----------------------------------- #

def im2col_3x3(x_nhwc, stride):
    """(N,H,W,C) -> (N,Ho,Wo,9*C), tap order (kh, kw, ci), pad=1."""
    N, H, W, C = x_nhwc.shape
    xp = jnp.pad(x_nhwc, ((0, 0), (1, 1), (1, 1), (0, 0)))
    Ho = (H + 2 - 3) // stride + 1
    Wo = (W + 2 - 3) // stride + 1
    taps = []
    for kh in range(3):
        for kw in range(3):
            taps.append(
                xp[:, kh:kh + (Ho - 1) * stride + 1:stride,
                      kw:kw + (Wo - 1) * stride + 1:stride, :])
    return jnp.concatenate(taps, axis=-1), Ho, Wo


def w3x3_to_mat(w_oihw):
    """(Cout,Cin,3,3) -> (9*Cin, Cout) matching (kh,kw,ci) column order."""
    return jnp.transpose(w_oihw, (2, 3, 1, 0)).reshape(-1, w_oihw.shape[0])


def w1x1_to_mat(w_oihw):
    return jnp.transpose(w_oihw[:, :, 0, 0], (1, 0))  # (Cin, Cout)


def residual_block_base_forward(x_nchw, params, *, stride):
    N, Cin, H, W = x_nchw.shape
    Cout = params["w1"].shape[0]
    down_sample = (stride != 1) or (Cin != Cout)

    x = jnp.transpose(x_nchw, (0, 2, 3, 1)).astype(jnp.float32)  # NHWC
    x_bf = x.astype(jnp.bfloat16)

    # --- conv1 (3x3, stride) + bn1 + relu ---
    p1, Ho, Wo = im2col_3x3(x_bf, stride)
    M = N * Ho * Wo
    y1 = conv_bn_act(p1.reshape(M, -1), w3x3_to_mat(params["w1"]),
                     params["g1"], params["be1"], eps=1e-4, relu=True)

    # --- identity path ---
    if down_sample:
        xs = x_bf[:, ::stride, ::stride, :].reshape(M, Cin)
        identity = conv_bn_act(xs, w1x1_to_mat(params["wd"]),
                               params["gd"], params["bed"],
                               eps=1e-5, relu=False)
    else:
        identity = x.reshape(M, Cout)

    # --- conv2 (3x3, stride 1) + bn2 + residual add + relu ---
    y1_nhwc = y1.astype(jnp.bfloat16).reshape(N, Ho, Wo, Cout)
    p2, _, _ = im2col_3x3(y1_nhwc, 1)
    out = conv_bn_act(p2.reshape(M, -1), w3x3_to_mat(params["w2"]),
                      params["g2"], params["be2"], eps=1e-4, relu=True,
                      residual=identity)

    out = out.reshape(N, Ho, Wo, Cout)
    return jnp.transpose(out, (0, 3, 1, 2))  # back to NCHW


# --------------------------- pure-JAX reference ----------------------------- #

def _conv_nchw(x, w, b, stride, pad):
    y = lax.conv_general_dilated(
        x, w, (stride, stride), [(pad, pad), (pad, pad)],
        dimension_numbers=("NCHW", "OIHW", "NCHW"))
    return y + b[None, :, None, None]


def _bn_train(y, gamma, beta, eps):
    mean = y.mean(axis=(0, 2, 3), keepdims=True)
    var = jnp.square(y - mean).mean(axis=(0, 2, 3), keepdims=True)
    return ((y - mean) / jnp.sqrt(var + eps)) * gamma[None, :, None, None] \
        + beta[None, :, None, None]


def reference_forward(x, params, *, stride):
    Cin = x.shape[1]
    Cout = params["w1"].shape[0]
    out = _conv_nchw(x, params["w1"], params["b1"], stride, 1)
    out = jnp.maximum(_bn_train(out, params["g1"], params["be1"], 1e-4), 0.0)
    out = _conv_nchw(out, params["w2"], params["b2"], 1, 1)
    out = _bn_train(out, params["g2"], params["be2"], 1e-4)
    if stride != 1 or Cin != Cout:
        identity = _conv_nchw(x, params["wd"], params["bd"], stride, 0)
        identity = _bn_train(identity, params["gd"], params["bed"], 1e-5)
    else:
        identity = x
    return jnp.maximum(out + identity, 0.0)


# --------------------------------- main ------------------------------------- #

if __name__ == "__main__":
    key = jax.random.PRNGKey(0)
    N, Cin, H, W = 2, 4, 16, 16
    Cout, stride = 8, 2

    ks = jax.random.split(key, 12)

    def kaiming_fan_out(k, shape):
        fan_out = shape[0] * shape[2] * shape[3]
        std = np.sqrt(2.0 / fan_out)
        return jax.random.normal(k, shape, jnp.float32) * std

    params = {
        "w1": kaiming_fan_out(ks[0], (Cout, Cin, 3, 3)),
        "b1": jax.random.normal(ks[1], (Cout,), jnp.float32) * 0.01,
        "g1": 1.0 + 0.1 * jax.random.normal(ks[2], (Cout,), jnp.float32),
        "be1": 0.1 * jax.random.normal(ks[3], (Cout,), jnp.float32),
        "w2": kaiming_fan_out(ks[4], (Cout, Cout, 3, 3)),
        "b2": jax.random.normal(ks[5], (Cout,), jnp.float32) * 0.01,
        "g2": 1.0 + 0.1 * jax.random.normal(ks[6], (Cout,), jnp.float32),
        "be2": 0.1 * jax.random.normal(ks[7], (Cout,), jnp.float32),
        "wd": kaiming_fan_out(ks[8], (Cout, Cin, 1, 1)),
        "bd": jax.random.normal(ks[9], (Cout,), jnp.float32) * 0.01,
        "gd": 1.0 + 0.1 * jax.random.normal(ks[10], (Cout,), jnp.float32),
        "bed": 0.1 * jax.random.normal(ks[11], (Cout,), jnp.float32),
    }

    x = jax.random.normal(jax.random.PRNGKey(42), (N, Cin, H, W), jnp.float32)

    fwd = jax.jit(functools.partial(residual_block_base_forward, stride=stride))
    out = jax.block_until_ready(fwd(x, params))

    ref = jax.block_until_ready(
        jax.jit(functools.partial(reference_forward, stride=stride))(x, params))

    assert out.shape == (N, Cout, H // stride, W // stride), out.shape
    # bf16 MXU operands (f32 accumulation) -> compare at bf16-level tolerance.
    np.testing.assert_allclose(np.asarray(out), np.asarray(ref),
                               rtol=2e-2, atol=2e-2)
    print("KERNEL_OK")
</pallas_src>

<mosaic_0001>
module attributes {stable_mosaic.version = 11 : i64} {
  func.func @_mm_stats_kernel(%arg0: i32, %arg1: memref<128x36xbf16, #tpu.memory_space<vmem>>, %arg2: memref<36x128xbf16, #tpu.memory_space<vmem>>, %arg3: memref<128x128xf32, #tpu.memory_space<vmem>>, %arg4: memref<8x128xf32, #tpu.memory_space<vmem>>, %arg5: memref<8x128xf32, #tpu.memory_space<vmem>>) attributes {dimension_semantics = [#tpu.dimension_semantics<parallel>], iteration_bounds = array<i64: 1>, scalar_prefetch = 0 : i64, scratch_operands = 0 : i64, tpu.core_type = #tpu.core_type<tc>, window_params = [{transform_indices = @transform_0, window_bounds = array<i64: 128, 36>}, {pipeline_mode = #tpu.pipeline_mode<synchronous>, transform_indices = @transform_1, window_bounds = array<i64: 36, 128>}, {transform_indices = @transform_2, window_bounds = array<i64: 128, 128>}, {transform_indices = @transform_3, window_bounds = array<i64: 8, 128>}, {transform_indices = @transform_4, window_bounds = array<i64: 8, 128>}]} {
    %c0 = arith.constant 0 : index
    %c0_0 = arith.constant 0 : index
    %0 = vector.load %arg1[%c0, %c0_0] : memref<128x36xbf16, #tpu.memory_space<vmem>>, vector<128x36xbf16>
    %c0_1 = arith.constant 0 : index
    %c0_2 = arith.constant 0 : index
    %1 = vector.load %arg2[%c0_1, %c0_2] : memref<36x128xbf16, #tpu.memory_space<vmem>>, vector<36x128xbf16>
    %cst = arith.constant dense<0.000000e+00> : vector<128x128xf32>
    %2 = tpu.matmul %0, %1, %cst {dimension_numbers = #tpu.dot_dimension_numbers<[1], [0], [0], [1], [0, 0, 1, 1], [], []>} : vector<128x36xbf16>, vector<36x128xbf16>, vector<128x128xf32> -> vector<128x128xf32>
    %c0_3 = arith.constant 0 : index
    %c0_4 = arith.constant 0 : index
    %3 = vector.load %arg3[%c0_3, %c0_4] : memref<128x128xf32, #tpu.memory_space<vmem>>, vector<128x128xf32>
    tpu.vector_store %arg3[%c0_3, %c0_4], %2 {strides = array<i32>} : memref<128x128xf32, #tpu.memory_space<vmem>>, vector<128x128xf32>,
    %cst_5 = arith.constant dense<0.000000e+00> : vector<128xf32>
    %4 = vector.multi_reduction <add>, %2, %cst_5 [0] : vector<128x128xf32> to vector<128xf32>
    %5 = vector.shape_cast %4 : vector<128xf32> to vector<1x128xf32>
    %6 = arith.mulf %2, %2 : vector<128x128xf32>
    %cst_6 = arith.constant dense<0.000000e+00> : vector<128xf32>
    %7 = vector.multi_reduction <add>, %6, %cst_6 [0] : vector<128x128xf32> to vector<128xf32>
    %8 = vector.shape_cast %7 : vector<128xf32> to vector<1x128xf32>
    %9 = vector.shape_cast %5 : vector<1x128xf32> to vector<1x128xf32>
    %10 = vector.broadcast %9 : vector<1x128xf32> to vector<8x128xf32>
    %c0_7 = arith.constant 0 : index
    %c0_8 = arith.constant 0 : index
    %11 = vector.load %arg4[%c0_7, %c0_8] : memref<8x128xf32, #tpu.memory_space<vmem>>, vector<8x128xf32>
    tpu.vector_store %arg4[%c0_7, %c0_8], %10 {strides = array<i32>} : memref<8x128xf32, #tpu.memory_space<vmem>>, vector<8x128xf32>,
    %12 = vector.shape_cast %8 : vector<1x128xf32> to vector<1x128xf32>
    %13 = vector.broadcast %12 : vector<1x128xf32> to vector<8x128xf32>
    %c0_9 = arith.constant 0 : index
    %c0_10 = arith.constant 0 : index
    %14 = vector.load %arg5[%c0_9, %c0_10] : memref<8x128xf32, #tpu.memory_space<vmem>>, vector<8x128xf32>
    tpu.vector_store %arg5[%c0_9, %c0_10], %13 {strides = array<i32>} : memref<8x128xf32, #tpu.memory_space<vmem>>, vector<8x128xf32>,
    return
  }
  func.func @transform_0(%arg0: i32) -> (i32, i32) {
    %c0_i32 = arith.constant 0 : i32
    %c0_i32_0 = arith.constant 0 : i32
    return %arg0, %c0_i32 : i32, i32
  }
  func.func @transform_1(%arg0: i32) -> (i32, i32) {
    %c0_i32 = arith.constant 0 : i32
    %c0_i32_0 = arith.constant 0 : i32
    %c0_i32_1 = arith.constant 0 : i32
    return %c0_i32, %c0_i32_0 : i32, i32
  }
  func.func @transform_2(%arg0: i32) -> (i32, i32) {
    %c0_i32 = arith.constant 0 : i32
    %c0_i32_0 = arith.constant 0 : i32
    return %arg0, %c0_i32 : i32, i32
  }
  func.func @transform_3(%arg0: i32) -> (i32, i32) {
    %c0_i32 = arith.constant 0 : i32
    %c0_i32_0 = arith.constant 0 : i32
    return %arg0, %c0_i32 : i32, i32
  }
  func.func @transform_4(%arg0: i32) -> (i32, i32) {
    %c0_i32 = arith.constant 0 : i32
    %c0_i32_0 = arith.constant 0 : i32
    return %arg0, %c0_i32 : i32, i32
  }
}

module attributes {stable_mosaic.version = 11 : i64} {
  func.func @kernel(%arg0: i32, %arg1: memref<128x128xf32, #tpu.memory_space<vmem>>, %arg2: memref<1x128xf32, #tpu.memory_space<vmem>>, %arg3: memref<1x128xf32, #tpu.memory_space<vmem>>, %arg4: memref<128x128xf32, #tpu.memory_space<vmem>>) attributes {dimension_semantics = [#tpu.dimension_semantics<parallel>], iteration_bounds = array<i64: 1>, scalar_prefetch = 0 : i64, scratch_operands = 0 : i64, tpu.core_type = #tpu.core_type<tc>, window_params = [{transform_indices = @transform_0, window_bounds = array<i64: 128, 128>}, {pipeline_mode = #tpu.pipeline_mode<synchronous>, transform_indices = @transform_1, window_bounds = array<i64: 1, 128>}, {pipeline_mode = #tpu.pipeline_mode<synchronous>, transform_indices = @transform_2, window_bounds = array<i64: 1, 128>}, {transform_indices = @transform_3, window_bounds = array<i64: 128, 128>}]} {
    %c0 = arith.constant 0 : index
    %c0_0 = arith.constant 0 : index
    %0 = vector.load %arg1[%c0, %c0_0] : memref<128x128xf32, #tpu.memory_space<vmem>>, vector<128x128xf32>
    %c0_1 = arith.constant 0 : index
    %c0_2 = arith.constant 0 : index
    %1 = vector.load %arg2[%c0_1, %c0_2] : memref<1x128xf32, #tpu.memory_space<vmem>>, vector<1x128xf32>
    %2 = vector.broadcast %1 : vector<1x128xf32> to vector<128x128xf32>
    %3 = arith.mulf %0, %2 : vector<128x128xf32>
    %c0_3 = arith.constant 0 : index
    %c0_4 = arith.constant 0 : index
    %4 = vector.load %arg3[%c0_3, %c0_4] : memref<1x128xf32, #tpu.memory_space<vmem>>, vector<1x128xf32>
    %5 = vector.broadcast %4 : vector<1x128xf32> to vector<128x128xf32>
    %6 = arith.addf %3, %5 : vector<128x128xf32>
    %cst = arith.constant 0.000000e+00 : f32
    %7 = vector.broadcast %cst : f32 to vector<128x128xf32>
    %8 = arith.maximumf %6, %7 : vector<128x128xf32>
    %c0_5 = arith.constant 0 : index
    %c0_6 = arith.constant 0 : index
    %9 = vector.load %arg4[%c0_5, %c0_6] : memref<128x128xf32, #tpu.memory_space<vmem>>, vector<128x128xf32>
    tpu.vector_store %arg4[%c0_5, %c0_6], %8 {strides = array<i32>} : memref<128x128xf32, #tpu.memory_space<vmem>>, vector<128x128xf32>,
    return
  }
  func.func @transform_0(%arg0: i32) -> (i32, i32) {
    %c0_i32 = arith.constant 0 : i32
    %c0_i32_0 = arith.constant 0 : i32
    return %arg0, %c0_i32 : i32, i32
  }
  func.func @transform_1(%arg0: i32) -> (i32, i32) {
    %c0_i32 = arith.constant 0 : i32
    %c0_i32_0 = arith.constant 0 : i32
    %c0_i32_1 = arith.constant 0 : i32
    return %c0_i32, %c0_i32_0 : i32, i32
  }
  func.func @transform_2(%arg0: i32) -> (i32, i32) {
    %c0_i32 = arith.constant 0 : i32
    %c0_i32_0 = arith.constant 0 : i32
    %c0_i32_1 = arith.constant 0 : i32
    return %c0_i32, %c0_i32_0 : i32, i32
  }
  func.func @transform_3(%arg0: i32) -> (i32, i32) {
    %c0_i32 = arith.constant 0 : i32
    %c0_i32_0 = arith.constant 0 : i32
    return %arg0, %c0_i32 : i32, i32
  }
}

module attributes {stable_mosaic.version = 11 : i64} {
  func.func @_mm_stats_kernel(%arg0: i32, %arg1: memref<128x72xbf16, #tpu.memory_space<vmem>>, %arg2: memref<72x128xbf16, #tpu.memory_space<vmem>>, %arg3: memref<128x128xf32, #tpu.memory_space<vmem>>, %arg4: memref<8x128xf32, #tpu.memory_space<vmem>>, %arg5: memref<8x128xf32, #tpu.memory_space<vmem>>) attributes {dimension_semantics = [#tpu.dimension_semantics<parallel>], iteration_bounds = array<i64: 1>, scalar_prefetch = 0 : i64, scratch_operands = 0 : i64, tpu.core_type = #tpu.core_type<tc>, window_params = [{transform_indices = @transform_0, window_bounds = array<i64: 128, 72>}, {pipeline_mode = #tpu.pipeline_mode<synchronous>, transform_indices = @transform_1, window_bounds = array<i64: 72, 128>}, {transform_indices = @transform_2, window_bounds = array<i64: 128, 128>}, {transform_indices = @transform_3, window_bounds = array<i64: 8, 128>}, {transform_indices = @transform_4, window_bounds = array<i64: 8, 128>}]} {
    %c0 = arith.constant 0 : index
    %c0_0 = arith.constant 0 : index
    %0 = vector.load %arg1[%c0, %c0_0] : memref<128x72xbf16, #tpu.memory_space<vmem>>, vector<128x72xbf16>
    %c0_1 = arith.constant 0 : index
    %c0_2 = arith.constant 0 : index
    %1 = vector.load %arg2[%c0_1, %c0_2] : memref<72x128xbf16, #tpu.memory_space<vmem>>, vector<72x128xbf16>
    %cst = arith.constant dense<0.000000e+00> : vector<128x128xf32>
    %2 = tpu.matmul %0, %1, %cst {dimension_numbers = #tpu.dot_dimension_numbers<[1], [0], [0], [1], [0, 0, 1, 1], [], []>} : vector<128x72xbf16>, vector<72x128xbf16>, vector<128x128xf32> -> vector<128x128xf32>
    %c0_3 = arith.constant 0 : index
    %c0_4 = arith.constant 0 : index
    %3 = vector.load %arg3[%c0_3, %c0_4] : memref<128x128xf32, #tpu.memory_space<vmem>>, vector<128x128xf32>
    tpu.vector_store %arg3[%c0_3, %c0_4], %2 {strides = array<i32>} : memref<128x128xf32, #tpu.memory_space<vmem>>, vector<128x128xf32>,
    %cst_5 = arith.constant dense<0.000000e+00> : vector<128xf32>
    %4 = vector.multi_reduction <add>, %2, %cst_5 [0] : vector<128x128xf32> to vector<128xf32>
    %5 = vector.shape_cast %4 : vector<128xf32> to vector<1x128xf32>
    %6 = arith.mulf %2, %2 : vector<128x128xf32>
    %cst_6 = arith.constant dense<0.000000e+00> : vector<128xf32>
    %7 = vector.multi_reduction <add>, %6, %cst_6 [0] : vector<128x128xf32> to vector<128xf32>
    %8 = vector.shape_cast %7 : vector<128xf32> to vector<1x128xf32>
    %9 = vector.shape_cast %5 : vector<1x128xf32> to vector<1x128xf32>
    %10 = vector.broadcast %9 : vector<1x128xf32> to vector<8x128xf32>
    %c0_7 = arith.constant 0 : index
    %c0_8 = arith.constant 0 : index
    %11 = vector.load %arg4[%c0_7, %c0_8] : memref<8x128xf32, #tpu.memory_space<vmem>>, vector<8x128xf32>
    tpu.vector_store %arg4[%c0_7, %c0_8], %10 {strides = array<i32>} : memref<8x128xf32, #tpu.memory_space<vmem>>, vector<8x128xf32>,
    %12 = vector.shape_cast %8 : vector<1x128xf32> to vector<1x128xf32>
    %13 = vector.broadcast %12 : vector<1x128xf32> to vector<8x128xf32>
    %c0_9 = arith.constant 0 : index
    %c0_10 = arith.constant 0 : index
    %14 = vector.load %arg5[%c0_9, %c0_10] : memref<8x128xf32, #tpu.memory_space<vmem>>, vector<8x128xf32>
    tpu.vector_store %arg5[%c0_9, %c0_10], %13 {strides = array<i32>} : memref<8x128xf32, #tpu.memory_space<vmem>>, vector<8x128xf32>,
    return
  }
  func.func @transform_0(%arg0: i32) -> (i32, i32) {
    %c0_i32 = arith.constant 0 : i32
    %c0_i32_0 = arith.constant 0 : i32
    return %arg0, %c0_i32 : i32, i32
  }
  func.func @transform_1(%arg0: i32) -> (i32, i32) {
    %c0_i32 = arith.constant 0 : i32
    %c0_i32_0 = arith.constant 0 : i32
    %c0_i32_1 = arith.constant 0 : i32
    return %c0_i32, %c0_i32_0 : i32, i32
  }
  func.func @transform_2(%arg0: i32) -> (i32, i32) {
    %c0_i32 = arith.constant 0 : i32
    %c0_i32_0 = arith.constant 0 : i32
    return %arg0, %c0_i32 : i32, i32
  }
  func.func @transform_3(%arg0: i32) -> (i32, i32) {
    %c0_i32 = arith.constant 0 : i32
    %c0_i32_0 = arith.constant 0 : i32
    return %arg0, %c0_i32 : i32, i32
  }
  func.func @transform_4(%arg0: i32) -> (i32, i32) {
    %c0_i32 = arith.constant 0 : i32
    %c0_i32_0 = arith.constant 0 : i32
    return %arg0, %c0_i32 : i32, i32
  }
}

module attributes {stable_mosaic.version = 11 : i64} {
  func.func @_mm_stats_kernel(%arg0: i32, %arg1: memref<128x4xbf16, #tpu.memory_space<vmem>>, %arg2: memref<4x128xbf16, #tpu.memory_space<vmem>>, %arg3: memref<128x128xf32, #tpu.memory_space<vmem>>, %arg4: memref<8x128xf32, #tpu.memory_space<vmem>>, %arg5: memref<8x128xf32, #tpu.memory_space<vmem>>) attributes {dimension_semantics = [#tpu.dimension_semantics<parallel>], iteration_bounds = array<i64: 1>, scalar_prefetch = 0 : i64, scratch_operands = 0 : i64, tpu.core_type = #tpu.core_type<tc>, window_params = [{transform_indices = @transform_0, window_bounds = array<i64: 128, 4>}, {pipeline_mode = #tpu.pipeline_mode<synchronous>, transform_indices = @transform_1, window_bounds = array<i64: 4, 128>}, {transform_indices = @transform_2, window_bounds = array<i64: 128, 128>}, {transform_indices = @transform_3, window_bounds = array<i64: 8, 128>}, {transform_indices = @transform_4, window_bounds = array<i64: 8, 128>}]} {
    %c0 = arith.constant 0 : index
    %c0_0 = arith.constant 0 : index
    %0 = vector.load %arg1[%c0, %c0_0] : memref<128x4xbf16, #tpu.memory_space<vmem>>, vector<128x4xbf16>
    %c0_1 = arith.constant 0 : index
    %c0_2 = arith.constant 0 : index
    %1 = vector.load %arg2[%c0_1, %c0_2] : memref<4x128xbf16, #tpu.memory_space<vmem>>, vector<4x128xbf16>
    %cst = arith.constant dense<0.000000e+00> : vector<128x128xf32>
    %2 = tpu.matmul %0, %1, %cst {dimension_numbers = #tpu.dot_dimension_numbers<[1], [0], [0], [1], [0, 0, 1, 1], [], []>} : vector<128x4xbf16>, vector<4x128xbf16>, vector<128x128xf32> -> vector<128x128xf32>
    %c0_3 = arith.constant 0 : index
    %c0_4 = arith.constant 0 : index
    %3 = vector.load %arg3[%c0_3, %c0_4] : memref<128x128xf32, #tpu.memory_space<vmem>>, vector<128x128xf32>
    tpu.vector_store %arg3[%c0_3, %c0_4], %2 {strides = array<i32>} : memref<128x128xf32, #tpu.memory_space<vmem>>, vector<128x128xf32>,
    %cst_5 = arith.constant dense<0.000000e+00> : vector<128xf32>
    %4 = vector.multi_reduction <add>, %2, %cst_5 [0] : vector<128x128xf32> to vector<128xf32>
    %5 = vector.shape_cast %4 : vector<128xf32> to vector<1x128xf32>
    %6 = arith.mulf %2, %2 : vector<128x128xf32>
    %cst_6 = arith.constant dense<0.000000e+00> : vector<128xf32>
    %7 = vector.multi_reduction <add>, %6, %cst_6 [0] : vector<128x128xf32> to vector<128xf32>
    %8 = vector.shape_cast %7 : vector<128xf32> to vector<1x128xf32>
    %9 = vector.shape_cast %5 : vector<1x128xf32> to vector<1x128xf32>
    %10 = vector.broadcast %9 : vector<1x128xf32> to vector<8x128xf32>
    %c0_7 = arith.constant 0 : index
    %c0_8 = arith.constant 0 : index
    %11 = vector.load %arg4[%c0_7, %c0_8] : memref<8x128xf32, #tpu.memory_space<vmem>>, vector<8x128xf32>
    tpu.vector_store %arg4[%c0_7, %c0_8], %10 {strides = array<i32>} : memref<8x128xf32, #tpu.memory_space<vmem>>, vector<8x128xf32>,
    %12 = vector.shape_cast %8 : vector<1x128xf32> to vector<1x128xf32>
    %13 = vector.broadcast %12 : vector<1x128xf32> to vector<8x128xf32>
    %c0_9 = arith.constant 0 : index
    %c0_10 = arith.constant 0 : index
    %14 = vector.load %arg5[%c0_9, %c0_10] : memref<8x128xf32, #tpu.memory_space<vmem>>, vector<8x128xf32>
    tpu.vector_store %arg5[%c0_9, %c0_10], %13 {strides = array<i32>} : memref<8x128xf32, #tpu.memory_space<vmem>>, vector<8x128xf32>,
    return
  }
  func.func @transform_0(%arg0: i32) -> (i32, i32) {
    %c0_i32 = arith.constant 0 : i32
    %c0_i32_0 = arith.constant 0 : i32
    return %arg0, %c0_i32 : i32, i32
  }
  func.func @transform_1(%arg0: i32) -> (i32, i32) {
    %c0_i32 = arith.constant 0 : i32
    %c0_i32_0 = arith.constant 0 : i32
    %c0_i32_1 = arith.constant 0 : i32
    return %c0_i32, %c0_i32_0 : i32, i32
  }
  func.func @transform_2(%arg0: i32) -> (i32, i32) {
    %c0_i32 = arith.constant 0 : i32
    %c0_i32_0 = arith.constant 0 : i32
    return %arg0, %c0_i32 : i32, i32
  }
  func.func @transform_3(%arg0: i32) -> (i32, i32) {
    %c0_i32 = arith.constant 0 : i32
    %c0_i32_0 = arith.constant 0 : i32
    return %arg0, %c0_i32 : i32, i32
  }
  func.func @transform_4(%arg0: i32) -> (i32, i32) {
    %c0_i32 = arith.constant 0 : i32
    %c0_i32_0 = arith.constant 0 : i32
    return %arg0, %c0_i32 : i32, i32
  }
}

module attributes {stable_mosaic.version = 11 : i64} {
  func.func @kernel(%arg0: i32, %arg1: memref<128x128xf32, #tpu.memory_space<vmem>>, %arg2: memref<1x128xf32, #tpu.memory_space<vmem>>, %arg3: memref<1x128xf32, #tpu.memory_space<vmem>>, %arg4: memref<128x128xf32, #tpu.memory_space<vmem>>) attributes {dimension_semantics = [#tpu.dimension_semantics<parallel>], iteration_bounds = array<i64: 1>, scalar_prefetch = 0 : i64, scratch_operands = 0 : i64, tpu.core_type = #tpu.core_type<tc>, window_params = [{transform_indices = @transform_0, window_bounds = array<i64: 128, 128>}, {pipeline_mode = #tpu.pipeline_mode<synchronous>, transform_indices = @transform_1, window_bounds = array<i64: 1, 128>}, {pipeline_mode = #tpu.pipeline_mode<synchronous>, transform_indices = @transform_2, window_bounds = array<i64: 1, 128>}, {transform_indices = @transform_3, window_bounds = array<i64: 128, 128>}]} {
    %c0 = arith.constant 0 : index
    %c0_0 = arith.constant 0 : index
    %0 = vector.load %arg1[%c0, %c0_0] : memref<128x128xf32, #tpu.memory_space<vmem>>, vector<128x128xf32>
    %c0_1 = arith.constant 0 : index
    %c0_2 = arith.constant 0 : index
    %1 = vector.load %arg2[%c0_1, %c0_2] : memref<1x128xf32, #tpu.memory_space<vmem>>, vector<1x128xf32>
    %2 = vector.broadcast %1 : vector<1x128xf32> to vector<128x128xf32>
    %3 = arith.mulf %0, %2 : vector<128x128xf32>
    %c0_3 = arith.constant 0 : index
    %c0_4 = arith.constant 0 : index
    %4 = vector.load %arg3[%c0_3, %c0_4] : memref<1x128xf32, #tpu.memory_space<vmem>>, vector<1x128xf32>
    %5 = vector.broadcast %4 : vector<1x128xf32> to vector<128x128xf32>
    %6 = arith.addf %3, %5 : vector<128x128xf32>
    %c0_5 = arith.constant 0 : index
    %c0_6 = arith.constant 0 : index
    %7 = vector.load %arg4[%c0_5, %c0_6] : memref<128x128xf32, #tpu.memory_space<vmem>>, vector<128x128xf32>
    tpu.vector_store %arg4[%c0_5, %c0_6], %6 {strides = array<i32>} : memref<128x128xf32, #tpu.memory_space<vmem>>, vector<128x128xf32>,
    return
  }
  func.func @transform_0(%arg0: i32) -> (i32, i32) {
    %c0_i32 = arith.constant 0 : i32
    %c0_i32_0 = arith.constant 0 : i32
    return %arg0, %c0_i32 : i32, i32
  }
  func.func @transform_1(%arg0: i32) -> (i32, i32) {
    %c0_i32 = arith.constant 0 : i32
    %c0_i32_0 = arith.constant 0 : i32
    %c0_i32_1 = arith.constant 0 : i32
    return %c0_i32, %c0_i32_0 : i32, i32
  }
  func.func @transform_2(%arg0: i32) -> (i32, i32) {
    %c0_i32 = arith.constant 0 : i32
    %c0_i32_0 = arith.constant 0 : i32
    %c0_i32_1 = arith.constant 0 : i32
    return %c0_i32, %c0_i32_0 : i32, i32
  }
  func.func @transform_3(%arg0: i32) -> (i32, i32) {
    %c0_i32 = arith.constant 0 : i32
    %c0_i32_0 = arith.constant 0 : i32
    return %arg0, %c0_i32 : i32, i32
  }
}

module attributes {stable_mosaic.version = 11 : i64} {
  func.func @kernel(%arg0: i32, %arg1: memref<128x128xf32, #tpu.memory_space<vmem>>, %arg2: memref<1x128xf32, #tpu.memory_space<vmem>>, %arg3: memref<1x128xf32, #tpu.memory_space<vmem>>, %arg4: memref<128x128xf32, #tpu.memory_space<vmem>>, %arg5: memref<128x128xf32, #tpu.memory_space<vmem>>) attributes {dimension_semantics = [#tpu.dimension_semantics<parallel>], iteration_bounds = array<i64: 1>, scalar_prefetch = 0 : i64, scratch_operands = 0 : i64, tpu.core_type = #tpu.core_type<tc>, window_params = [{transform_indices = @transform_0, window_bounds = array<i64: 128, 128>}, {pipeline_mode = #tpu.pipeline_mode<synchronous>, transform_indices = @transform_1, window_bounds = array<i64: 1, 128>}, {pipeline_mode = #tpu.pipeline_mode<synchronous>, transform_indices = @transform_2, window_bounds = array<i64: 1, 128>}, {transform_indices = @transform_3, window_bounds = array<i64: 128, 128>}, {transform_indices = @transform_4, window_bounds = array<i64: 128, 128>}]} {
    %c0 = arith.constant 0 : index
    %c0_0 = arith.constant 0 : index
    %0 = vector.load %arg1[%c0, %c0_0] : memref<128x128xf32, #tpu.memory_space<vmem>>, vector<128x128xf32>
    %c0_1 = arith.constant 0 : index
    %c0_2 = arith.constant 0 : index
    %1 = vector.load %arg2[%c0_1, %c0_2] : memref<1x128xf32, #tpu.memory_space<vmem>>, vector<1x128xf32>
    %2 = vector.broadcast %1 : vector<1x128xf32> to vector<128x128xf32>
    %3 = arith.mulf %0, %2 : vector<128x128xf32>
    %c0_3 = arith.constant 0 : index
    %c0_4 = arith.constant 0 : index
    %4 = vector.load %arg3[%c0_3, %c0_4] : memref<1x128xf32, #tpu.memory_space<vmem>>, vector<1x128xf32>
    %5 = vector.broadcast %4 : vector<1x128xf32> to vector<128x128xf32>
    %6 = arith.addf %3, %5 : vector<128x128xf32>
    %c0_5 = arith.constant 0 : index
    %c0_6 = arith.constant 0 : index
    %7 = vector.load %arg4[%c0_5, %c0_6] : memref<128x128xf32, #tpu.memory_space<vmem>>, vector<128x128xf32>
    %8 = arith.addf %6, %7 : vector<128x128xf32>
    %cst = arith.constant 0.000000e+00 : f32
    %9 = vector.broadcast %cst : f32 to vector<128x128xf32>
    %10 = arith.maximumf %8, %9 : vector<128x128xf32>
    %c0_7 = arith.constant 0 : index
    %c0_8 = arith.constant 0 : index
    %11 = vector.load %arg5[%c0_7, %c0_8] : memref<128x128xf32, #tpu.memory_space<vmem>>, vector<128x128xf32>
    tpu.vector_store %arg5[%c0_7, %c0_8], %10 {strides = array<i32>} : memref<128x128xf32, #tpu.memory_space<vmem>>, vector<128x128xf32>,
    return
  }
  func.func @transform_0(%arg0: i32) -> (i32, i32) {
    %c0_i32 = arith.constant 0 : i32
    %c0_i32_0 = arith.constant 0 : i32
    return %arg0, %c0_i32 : i32, i32
  }
  func.func @transform_1(%arg0: i32) -> (i32, i32) {
    %c0_i32 = arith.constant 0 : i32
    %c0_i32_0 = arith.constant 0 : i32
    %c0_i32_1 = arith.constant 0 : i32
    return %c0_i32, %c0_i32_0 : i32, i32
  }
  func.func @transform_2(%arg0: i32) -> (i32, i32) {
    %c0_i32 = arith.constant 0 : i32
    %c0_i32_0 = arith.constant 0 : i32
    %c0_i32_1 = arith.constant 0 : i32
    return %c0_i32, %c0_i32_0 : i32, i32
  }
  func.func @transform_3(%arg0: i32) -> (i32, i32) {
    %c0_i32 = arith.constant 0 : i32
    %c0_i32_0 = arith.constant 0 : i32
    return %arg0, %c0_i32 : i32, i32
  }
  func.func @transform_4(%arg0: i32) -> (i32, i32) {
    %c0_i32 = arith.constant 0 : i32
    %c0_i32_0 = arith.constant 0 : i32
    return %arg0, %c0_i32 : i32, i32
  }
}

</mosaic_0001>

<llo_original>
// kernel: residual_block_base_forward.7
$region0: #{residual_block_base_forward.7}
  #allocation0 [shape = 'u32[]', space=smem, size = 0x4, offset = 0x4, fixed_abs, tag = 'smem constant byte address 0x4 - core index']
  #allocation1 [shape = 'u32[144,128]{1,0:T(1,128)}', space=vmem, size = 0x12000, scoped, tag = 'internal scratch']
  %s0 = inlined_call_operand.vmem [shape: f32[128,128], index: 0, kind: input, shape index: {}]
  %s1 = inlined_call_operand.vmem [shape: f32[1,128], index: 1, kind: input, shape index: {}]
  %s2 = inlined_call_operand.vmem [shape: f32[1,128], index: 2, kind: input, shape index: {}]
  %s3 = inlined_call_operand.vmem [shape: f32[128,128], index: 3, kind: output, shape index: {}]
  %s4 = sld [smem:[#allocation0]]
  $region22: #{residual_block_base_forward.7} parent=0
    _
  %s6 = ssub.s32 1, %s4
  %s7 = scalar_select 0, %s6, %s4
  // Predicated region
  $region2: #{residual_block_base_forward.7} parent=0 // pred_check
    _
  $region3: #{residual_block_base_forward.7} parent=0 // pred_check_branch
    %9 = sbr.rel (0) target = $region5
  $region4: #{residual_block_base_forward.7} parent=0 // pred_region
    _
  $region5: #{residual_block_base_forward.7} parent=0 // pred_fallthru
    _
  // Predicated region
  $region6: #{residual_block_base_forward.7} parent=0 // pred_check
    _
  $region7: #{residual_block_base_forward.7} parent=0 // pred_check_branch
    %11 = sbr.rel (0) target = $region9
  $region8: #{residual_block_base_forward.7} parent=0 // pred_region
    _
  $region9: #{residual_block_base_forward.7} parent=0 // pred_fallthru
    _
  // Predicated region
  $region10: #{residual_block_base_forward.7} parent=0 // pred_check
    _
  $region11: #{residual_block_base_forward.7} parent=0 // pred_check_branch
    %13 = sbr.rel (0) target = $region13
  $region12: #{residual_block_base_forward.7} parent=0 // pred_region
    _
  $region13: #{residual_block_base_forward.7} parent=0 // pred_fallthru
    _
  %v14 = vld [vmem:[%s0] sm:$0xff]
  %v15 = vld [vmem:[%s0 + $0x8] sm:$0xff]
  %v16 = vld [vmem:[%s0 + $0x10] sm:$0xff]
  %v17 = vld [vmem:[%s0 + $0x18] sm:$0xff]
  %v18 = vld [vmem:[%s0 + $0x20] sm:$0xff]
  %v19 = vld [vmem:[%s0 + $0x28] sm:$0xff]
  %v20 = vld [vmem:[%s0 + $0x30] sm:$0xff]
  %v21 = vld [vmem:[%s0 + $0x38] sm:$0xff]
  %v22 = vld [vmem:[%s0 + $0x40] sm:$0xff]
  %v23 = vld [vmem:[%s0 + $0x48] sm:$0xff]
  %v24 = vld [vmem:[%s0 + $0x50] sm:$0xff]
  %v25 = vld [vmem:[%s0 + $0x58] sm:$0xff]
  %v26 = vld [vmem:[%s0 + $0x60] sm:$0xff]
  %v27 = vld [vmem:[%s0 + $0x68] sm:$0xff]
  %v28 = vld [vmem:[%s0 + $0x70] sm:$0xff]
  %v29 = vld [vmem:[%s0 + $0x78] sm:$0xff]
  %v30 = vld [vmem:[%s1] sm:$0x1]
  %v32 = vlaneseq
  %v33 = vshrl.u32 %v32, 7
  %v34 = vsub.s32 0, %v33
  %v35 = vrot.slane %v30, %v34
  %v37 = vmul.f32 %v14, %v35
  %v38 = vmul.f32 %v15, %v35
  %v39 = vmul.f32 %v16, %v35
  %v40 = vmul.f32 %v17, %v35
  %v41 = vmul.f32 %v18, %v35
  %v42 = vmul.f32 %v19, %v35
  %v43 = vmul.f32 %v20, %v35
  %v44 = vmul.f32 %v21, %v35
  %v45 = vmul.f32 %v22, %v35
  %v46 = vmul.f32 %v23, %v35
  %v47 = vmul.f32 %v24, %v35
  %v48 = vmul.f32 %v25, %v35
  %v49 = vmul.f32 %v26, %v35
  %v50 = vmul.f32 %v27, %v35
  %v51 = vmul.f32 %v28, %v35
  %v52 = vmul.f32 %v29, %v35
  %v53 = vld [vmem:[%s2] sm:$0x1]
  %v55 = vlaneseq
  %v56 = vshrl.u32 %v55, 7
  %v57 = vsub.s32 0, %v56
  %v58 = vrot.slane %v53, %v57
  %v60 = vadd.f32 %v37, %v58
  %v61 = vadd.f32 %v38, %v58
  %v62 = vadd.f32 %v39, %v58
  %v63 = vadd.f32 %v40, %v58
  %v64 = vadd.f32 %v41, %v58
  %v65 = vadd.f32 %v42, %v58
  %v66 = vadd.f32 %v43, %v58
  %v67 = vadd.f32 %v44, %v58
  %v68 = vadd.f32 %v45, %v58
  %v69 = vadd.f32 %v46, %v58
  %v70 = vadd.f32 %v47, %v58
  %v71 = vadd.f32 %v48, %v58
  %v72 = vadd.f32 %v49, %v58
  %v73 = vadd.f32 %v50, %v58
  %v74 = vadd.f32 %v51, %v58
  %v75 = vadd.f32 %v52, %v58
  %v76 = vmax.f32 %v60, 0.0
  %v77 = vmax.f32 %v61, 0.0
  %v78 = vmax.f32 %v62, 0.0
  %v79 = vmax.f32 %v63, 0.0
  %v80 = vmax.f32 %v64, 0.0
  %v81 = vmax.f32 %v65, 0.0
  %v82 = vmax.f32 %v66, 0.0
  %v83 = vmax.f32 %v67, 0.0
  %v84 = vmax.f32 %v68, 0.0
  %v85 = vmax.f32 %v69, 0.0
  %v86 = vmax.f32 %v70, 0.0
  %v87 = vmax.f32 %v71, 0.0
  %v88 = vmax.f32 %v72, 0.0
  %v89 = vmax.f32 %v73, 0.0
  %v90 = vmax.f32 %v74, 0.0
  %v91 = vmax.f32 %v75, 0.0
  %92 = vst [vmem:[%s3] sm:$0xff] %v76
  %93 = vst [vmem:[%s3 + $0x8] sm:$0xff] %v77
  %94 = vst [vmem:[%s3 + $0x10] sm:$0xff] %v78
  %95 = vst [vmem:[%s3 + $0x18] sm:$0xff] %v79
  %96 = vst [vmem:[%s3 + $0x20] sm:$0xff] %v80
  %97 = vst [vmem:[%s3 + $0x28] sm:$0xff] %v81
  %98 = vst [vmem:[%s3 + $0x30] sm:$0xff] %v82
  %99 = vst [vmem:[%s3 + $0x38] sm:$0xff] %v83
  %100 = vst [vmem:[%s3 + $0x40] sm:$0xff] %v84
  %101 = vst [vmem:[%s3 + $0x48] sm:$0xff] %v85
  %102 = vst [vmem:[%s3 + $0x50] sm:$0xff] %v86
  %103 = vst [vmem:[%s3 + $0x58] sm:$0xff] %v87
  %104 = vst [vmem:[%s3 + $0x60] sm:$0xff] %v88
  %105 = vst [vmem:[%s3 + $0x68] sm:$0xff] %v89
  %106 = vst [vmem:[%s3 + $0x70] sm:$0xff] %v90
  %107 = vst [vmem:[%s3 + $0x78] sm:$0xff] %v91
  // Predicated region
  $region14: #{residual_block_base_forward.7} parent=0 // pred_check
    _
  $region15: #{residual_block_base_forward.7} parent=0 // pred_check_branch
    %109 = sbr.rel (0) target = $region17
  $region16: #{residual_block_base_forward.7} parent=0 // pred_region
    _
  $region17: #{residual_block_base_forward.7} parent=0 // pred_fallthru
    _
  // Predicated region
  $region18: #{residual_block_base_forward.7} parent=0 // pred_check
    _
  $region19: #{residual_block_base_forward.7} parent=0 // pred_check_branch
    %111 = sbr.rel (0) target = $region21
  $region20: #{residual_block_base_forward.7} parent=0 // pred_region
    _
  $region21: #{residual_block_base_forward.7} parent=0 // pred_fallthru
    _

// kernel: residual_block_base_forward.6
$region0: #{residual_block_base_forward.6}
  #allocation0 [shape = 'u32[]', space=smem, size = 0x4, offset = 0x4, fixed_abs, tag = 'smem constant byte address 0x4 - core index']
  #allocation1 [shape = 'u32[144,128]{1,0:T(1,128)}', space=vmem, size = 0x12000, scoped, tag = 'internal scratch']
  %s0 = inlined_call_operand.vmem [shape: bf16[128,36], index: 0, kind: input, shape index: {}]
  %s1 = inlined_call_operand.vmem [shape: bf16[36,128], index: 1, kind: input, shape index: {}]
  %s2 = inlined_call_operand.vmem [shape: f32[128,128], index: 2, kind: output, shape index: {0}]
  %s3 = inlined_call_operand.vmem [shape: f32[8,128], index: 3, kind: output, shape index: {1}]
  %s4 = inlined_call_operand.vmem [shape: f32[8,128], index: 4, kind: output, shape index: {2}]
  %5 = xla_tuple %s2, %s3, %s4
  %s6 = sld [smem:[#allocation0]]
  $region34: #{residual_block_base_forward.6} parent=0
    _
  %s8 = ssub.s32 1, %s6
  %s9 = scalar_select 0, %s8, %s6
  // Predicated region
  $region2: #{residual_block_base_forward.6} parent=0 // pred_check
    _
  $region3: #{residual_block_base_forward.6} parent=0 // pred_check_branch
    %11 = sbr.rel (0) target = $region5
  $region4: #{residual_block_base_forward.6} parent=0 // pred_region
    _
  $region5: #{residual_block_base_forward.6} parent=0 // pred_fallthru
    _
  // Predicated region
  $region6: #{residual_block_base_forward.6} parent=0 // pred_check
    _
  $region7: #{residual_block_base_forward.6} parent=0 // pred_check_branch
    %13 = sbr.rel (0) target = $region9
  $region8: #{residual_block_base_forward.6} parent=0 // pred_region
    _
  $region9: #{residual_block_base_forward.6} parent=0 // pred_fallthru
    _
  %v15 = vld [vmem:[%s0] sm:$0xf]
  %v16 = vld [vmem:[%s0 + $0x4] sm:$0xf]
  %v17 = vld [vmem:[%s0 + $0x8] sm:$0xf]
  %v18 = vld [vmem:[%s0 + $0xc] sm:$0xf]
  %v19 = vld [vmem:[%s0 + $0x10] sm:$0xf]
  %v20 = vld [vmem:[%s0 + $0x14] sm:$0xf]
  %v21 = vld [vmem:[%s0 + $0x18] sm:$0xf]
  %v22 = vld [vmem:[%s0 + $0x1c] sm:$0xf]
  %v23 = vld [vmem:[%s0 + $0x20] sm:$0xf]
  %v24 = vld [vmem:[%s0 + $0x24] sm:$0xf]
  %v25 = vld [vmem:[%s0 + $0x28] sm:$0xf]
  %v26 = vld [vmem:[%s0 + $0x2c] sm:$0xf]
  %v27 = vld [vmem:[%s0 + $0x30] sm:$0xf]
  %v28 = vld [vmem:[%s0 + $0x34] sm:$0xf]
  %v29 = vld [vmem:[%s0 + $0x38] sm:$0xf]
  %v30 = vld [vmem:[%s0 + $0x3c] sm:$0xf]
  %v31 = vld [vmem:[%s1] sm:$0xf]
  %v32 = vld [vmem:[%s1 + $0x4] sm:$0xf]
  %v33 = vld [vmem:[%s1 + $0x8] sm:$0xf]
  %v34 = vld [vmem:[%s1 + $0xc] sm:$0xf]
  %v35 = vld [vmem:[%s1 + $0x10] sm:$0x3]
  %v52 = vunpack.c.l.b16 %v15
  %v53 = vunpack.c.l.b16 %v16
  %v54 = vunpack.c.l.b16 %v17
  %v55 = vunpack.c.l.b16 %v18
  %v56 = vunpack.c.l.b16 %v19
  %v57 = vunpack.c.l.b16 %v20
  %v58 = vunpack.c.l.b16 %v21
  %v59 = vunpack.c.l.b16 %v22
  %v60 = vunpack.c.l.b16 %v23
  %v61 = vunpack.c.l.b16 %v24
  %v62 = vunpack.c.l.b16 %v25
  %v63 = vunpack.c.l.b16 %v26
  %v64 = vunpack.c.l.b16 %v27
  %v65 = vunpack.c.l.b16 %v28
  %v66 = vunpack.c.l.b16 %v29
  %v67 = vunpack.c.l.b16 %v30
  %v68 = vpack.c.b16 %v53, %v52
  %v69 = vpack.c.b16 %v55, %v54
  %v70 = vpack.c.b16 %v57, %v56
  %v71 = vpack.c.b16 %v59, %v58
  %v72 = vpack.c.b16 %v61, %v60
  %v73 = vpack.c.b16 %v63, %v62
  %v74 = vpack.c.b16 %v65, %v64
  %v75 = vpack.c.b16 %v67, %v66
  %v81 = vunpack.c.l.b16 %v31
  %v82 = vunpack.c.l.b16 %v32
  %v83 = vunpack.c.l.b16 %v33
  %v84 = vunpack.c.l.b16 %v34
  %v85 = vunpack.c.l.b16 %v35
  %v86 = vpack.c.b16 %v82, %v81
  %v87 = vpack.c.b16 %v84, %v83
  %v88 = vpack.c.b16 %v85, %v85
  %vm91 = vcmask 293888
  %v93 = vsel %vm91, %v68, 0
  %v96 = vsel %vm91, %v69, 0
  %v99 = vsel %vm91, %v70, 0
  %v102 = vsel %vm91, %v71, 0
  %v105 = vsel %vm91, %v72, 0
  %v108 = vsel %vm91, %v73, 0
  %v111 = vsel %vm91, %v74, 0
  %v114 = vsel %vm91, %v75, 0
  %vm116 = vcmask 1041408
  %v118 = vsel %vm116, %v88, 0
  %120 = vmatprep.subr.bf16.mxu0 0
  %121 = vmatpush1.bf16.msra.mxu0 %v86
  %122 = vmatprep.subr.bf16.mxu0 0
  %123 = vmatpush1.bf16.msra.mxu0 %v87
  %124 = vmatprep.subr.bf16.mxu0 0
  %125 = vmatpush1.bf16.msra.mxu0 %v118
  %126 = vmatprep.subr.bf16.mxu0 0
  %127 = vmatpush1.bf16.msra.mxu0 0
  %128 = vmatprep.subr.bf16.mxu0 0
  %129 = vmatpush1.bf16.msra.mxu0 0
  %130 = vmatprep.subr.bf16.mxu0 0
  %131 = vmatpush1.bf16.msra.mxu0 0
  %132 = vmatprep.subr.bf16.mxu0 0
  %133 = vmatpush1.bf16.msra.mxu0 0
  %134 = vmatprep.subr.bf16.mxu0 0
  %135 = vmatpush1.bf16.msra.mxu0 0
  %136 = vmatprep.subr.bf16.mxu0 0
  %137 = vmatpush1.bf16.msra.mxu0 0
  %138 = vmatprep.subr.bf16.mxu0 0
  %139 = vmatpush1.bf16.msra.mxu0 0
  %140 = vmatprep.subr.bf16.mxu0 0
  %141 = vmatpush1.bf16.msra.mxu0 0
  %142 = vmatprep.subr.bf16.mxu0 0
  %143 = vmatpush1.bf16.msra.mxu0 0
  %144 = vmatprep.subr.bf16.mxu0 0
  %145 = vmatpush1.bf16.msra.mxu0 0
  %146 = vmatprep.subr.bf16.mxu0 0
  %147 = vmatpush1.bf16.msra.mxu0 0
  %148 = vmatprep.subr.bf16.mxu0 0
  %149 = vmatpush1.bf16.msra.mxu0 0
  %150 = vmatprep.subr.bf16.mxu0 0
  %151 = vmatpush1.bf16.msra.mxu0 0
  %152 = vmatprep.mubr.bf16.mxu0 0
  %153 = vmatmul.mubr.bf16.gmra.mrb[0].mxu0 %v93
  %v154 = vpop.f32.mrb[0].mxu0
  %v155 = vadd.f32 0.0, %v154
  %v156 = vpop.f32.mrb[0].mxu0
  %v157 = vpop.f32.mrb[0].mxu0
  %v158 = vadd.f32 0.0, %v157
  %v159 = vpop.f32.mrb[0].mxu0
  %160 = vmatprep.mubr.bf16.mxu0 0
  %161 = vmatmul.mubr.bf16.gmra.mrb[0].mxu0 %v96
  %v162 = vpop.f32.mrb[0].mxu0
  %v163 = vadd.f32 0.0, %v162
  %v164 = vpop.f32.mrb[0].mxu0
  %v165 = vpop.f32.mrb[0].mxu0
  %v166 = vadd.f32 0.0, %v165
  %v167 = vpop.f32.mrb[0].mxu0
  %168 = vmatprep.mubr.bf16.mxu0 0
  %169 = vmatmul.mubr.bf16.gmra.mrb[0].mxu0 %v99
  %v170 = vpop.f32.mrb[0].mxu0
  %v171 = vadd.f32 0.0, %v170
  %v172 = vpop.f32.mrb[0].mxu0
  %v173 = vpop.f32.mrb[0].mxu0
  %v174 = vadd.f32 0.0, %v173
  %v175 = vpop.f32.mrb[0].mxu0
  %176 = vmatprep.mubr.bf16.mxu0 0
  %177 = vmatmul.mubr.bf16.gmra.mrb[0].mxu0 %v102
  %v178 = vpop.f32.mrb[0].mxu0
  %v179 = vadd.f32 0.0, %v178
  %v180 = vpop.f32.mrb[0].mxu0
  %v181 = vpop.f32.mrb[0].mxu0
  %v182 = vadd.f32 0.0, %v181
  %v183 = vpop.f32.mrb[0].mxu0
  %184 = vmatprep.mubr.bf16.mxu0 0
  %185 = vmatmul.mubr.bf16.gmra.mrb[0].mxu0 %v105
  %v186 = vpop.f32.mrb[0].mxu0
  %v187 = vadd.f32 0.0, %v186
  %v188 = vpop.f32.mrb[0].mxu0
  %v189 = vpop.f32.mrb[0].mxu0
  %v190 = vadd.f32 0.0, %v189
  %v191 = vpop.f32.mrb[0].mxu0
  %192 = vmatprep.mubr.bf16.mxu0 0
  %193 = vmatmul.mubr.bf16.gmra.mrb[0].mxu0 %v108
  %v194 = vpop.f32.mrb[0].mxu0
  %v195 = vadd.f32 0.0, %v194
  %v196 = vpop.f32.mrb[0].mxu0
  %v197 = vpop.f32.mrb[0].mxu0
  %v198 = vadd.f32 0.0, %v197
  %v199 = vpop.f32.mrb[0].mxu0
  %200 = vmatprep.mubr.bf16.mxu0 0
  %201 = vmatmul.mubr.bf16.gmra.mrb[0].mxu0 %v111
  %v202 = vpop.f32.mrb[0].mxu0
  %v203 = vadd.f32 0.0, %v202
  %v204 = vpop.f32.mrb[0].mxu0
  %v205 = vpop.f32.mrb[0].mxu0
  %v206 = vadd.f32 0.0, %v205
  %v207 = vpop.f32.mrb[0].mxu0
  %208 = vmatprep.mubr.bf16.mxu0 0
  %209 = vmatmul.mubr.bf16.gmra.mrb[0].mxu0 %v114
  %v210 = vpop.f32.mrb[0].mxu0
  %v211 = vadd.f32 0.0, %v210
  %v212 = vpop.f32.mrb[0].mxu0
  %v213 = vpop.f32.mrb[0].mxu0
  %v214 = vadd.f32 0.0, %v213
  %v215 = vpop.f32.mrb[0].mxu0
  %216 = vdwg.mxu0
  %217 = vst [vmem:[%s2] sm:$0xff] %v155
  %218 = vst [vmem:[%s2 + $0x8] sm:$0xff] %v158
  %219 = vst [vmem:[%s2 + $0x10] sm:$0xff] %v163
  %220 = vst [vmem:[%s2 + $0x18] sm:$0xff] %v166
  %221 = vst [vmem:[%s2 + $0x20] sm:$0xff] %v171
  %222 = vst [vmem:[%s2 + $0x28] sm:$0xff] %v174
  %223 = vst [vmem:[%s2 + $0x30] sm:$0xff] %v179
  %224 = vst [vmem:[%s2 + $0x38] sm:$0xff] %v182
  %225 = vst [vmem:[%s2 + $0x40] sm:$0xff] %v187
  %226 = vst [vmem:[%s2 + $0x48] sm:$0xff] %v190
  %227 = vst [vmem:[%s2 + $0x50] sm:$0xff] %v195
  %228 = vst [vmem:[%s2 + $0x58] sm:$0xff] %v198
  %229 = vst [vmem:[%s2 + $0x60] sm:$0xff] %v203
  %230 = vst [vmem:[%s2 + $0x68] sm:$0xff] %v206
  %231 = vst [vmem:[%s2 + $0x70] sm:$0xff] %v211
  %232 = vst [vmem:[%s2 + $0x78] sm:$0xff] %v214
  %v233 = vadd.f32 %v155, %v158
  %v234 = vadd.f32 %v233, %v163
  %v235 = vadd.f32 %v234, %v166
  %v236 = vadd.f32 %v235, %v171
  %v237 = vadd.f32 %v236, %v174
  %v238 = vadd.f32 %v237, %v179
  %v239 = vadd.f32 %v238, %v182
  %v240 = vadd.f32 %v239, %v187
  %v241 = vadd.f32 %v240, %v190
  %v242 = vadd.f32 %v241, %v195
  %v243 = vadd.f32 %v242, %v198
  %v244 = vadd.f32 %v243, %v203
  %v245 = vadd.f32 %v244, %v206
  %v246 = vadd.f32 %v245, %v211
  %v247 = vadd.f32 %v246, %v214
  %v248 = vrot.slane %v247, 4
  %v249 = vadd.f32 %v247, %v248
  %v250 = vrot.slane %v249, 2
  %v251 = vadd.f32 %v249, %v250
  %v252 = vrot.slane %v251, 1
  %v253 = vadd.f32 %v251, %v252
  %v254 = vmul.f32 %v155, %v155
  %v255 = vmul.f32 %v158, %v158
  %v256 = vmul.f32 %v163, %v163
  %v257 = vmul.f32 %v166, %v166
  %v258 = vmul.f32 %v171, %v171
  %v259 = vmul.f32 %v174, %v174
  %v260 = vmul.f32 %v179, %v179
  %v261 = vmul.f32 %v182, %v182
  %v262 = vmul.f32 %v187, %v187
  %v263 = vmul.f32 %v190, %v190
  %v264 = vmul.f32 %v195, %v195
  %v265 = vmul.f32 %v198, %v198
  %v266 = vmul.f32 %v203, %v203
  %v267 = vmul.f32 %v206, %v206
  %v268 = vmul.f32 %v211, %v211
  %v269 = vmul.f32 %v214, %v214
  %v270 = vadd.f32 %v254, %v255
  %v271 = vadd.f32 %v270, %v256
  %v272 = vadd.f32 %v271, %v257
  %v273 = vadd.f32 %v272, %v258
  %v274 = vadd.f32 %v273, %v259
  %v275 = vadd.f32 %v274, %v260
  %v276 = vadd.f32 %v275, %v261
  %v277 = vadd.f32 %v276, %v262
  %v278 = vadd.f32 %v277, %v263
  %v279 = vadd.f32 %v278, %v264
  %v280 = vadd.f32 %v279, %v265
  %v281 = vadd.f32 %v280, %v266
  %v282 = vadd.f32 %v281, %v267
  %v283 = vadd.f32 %v282, %v268
  %v284 = vadd.f32 %v283, %v269
  %v285 = vrot.slane %v284, 4
  %v286 = vadd.f32 %v284, %v285
  %v287 = vrot.slane %v286, 2
  %v288 = vadd.f32 %v286, %v287
  %v289 = vrot.slane %v288, 1
  %v290 = vadd.f32 %v288, %v289
  %291 = vst [vmem:[%s3] sm:$0xff] %v253
  %292 = vst [vmem:[%s4] sm:$0xff] %v290
  // Predicated region
  $region10: #{residual_block_base_forward.6} parent=0 // pred_check
    _
  $region11: #{residual_block_base_forward.6} parent=0 // pred_check_branch
    %294 = sbr.rel (0) target = $region13
  $region12: #{residual_block_base_forward.6} parent=0 // pred_region
    _
  $region13: #{residual_block_base_forward.6} parent=0 // pred_fallthru
    _
  // Predicated region
  $region14: #{residual_block_base_forward.6} parent=0 // pred_check
    _
  $region15: #{residual_block_base_forward.6} parent=0 // pred_check_branch
    %296 = sbr.rel (0) target = $region17
  $region16: #{residual_block_base_forward.6} parent=0 // pred_region
    _
  $region17: #{residual_block_base_forward.6} parent=0 // pred_fallthru
    _
  // Predicated region
  $region18: #{residual_block_base_forward.6} parent=0 // pred_check
    _
  $region19: #{residual_block_base_forward.6} parent=0 // pred_check_branch
    %298 = sbr.rel (0) target = $region21
  $region20: #{residual_block_base_forward.6} parent=0 // pred_region
    _
  $region21: #{residual_block_base_forward.6} parent=0 // pred_fallthru
    _
  // Predicated region
  $region22: #{residual_block_base_forward.6} parent=0 // pred_check
    _
  $region23: #{residual_block_base_forward.6} parent=0 // pred_check_branch
    %300 = sbr.rel (0) target = $region25
  $region24: #{residual_block_base_forward.6} parent=0 // pred_region
    _
  $region25: #{residual_block_base_forward.6} parent=0 // pred_fallthru
    _
  // Predicated region
  $region26: #{residual_block_base_forward.6} parent=0 // pred_check
    _
  $region27: #{residual_block_base_forward.6} parent=0 // pred_check_branch
    %302 = sbr.rel (0) target = $region29
  $region28: #{residual_block_base_forward.6} parent=0 // pred_region
    _
  $region29: #{residual_block_base_forward.6} parent=0 // pred_fallthru
    _
  // Predicated region
  $region30: #{residual_block_base_forward.6} parent=0 // pred_check
    _
  $region31: #{residual_block_base_forward.6} parent=0 // pred_check_branch
    %304 = sbr.rel (0) target = $region33
  $region32: #{residual_block_base_forward.6} parent=0 // pred_region
    _
  $region33: #{residual_block_base_forward.6} parent=0 // pred_fallthru
    _

// kernel: residual_block_base_forward.10
$region0: #{residual_block_base_forward.10}
  #allocation0 [shape = 'u32[]', space=smem, size = 0x4, offset = 0x4, fixed_abs, tag = 'smem constant byte address 0x4 - core index']
  #allocation1 [shape = 'u32[144,128]{1,0:T(1,128)}', space=vmem, size = 0x12000, scoped, tag = 'internal scratch']
  %s0 = inlined_call_operand.vmem [shape: bf16[128,72], index: 0, kind: input, shape index: {}]
  %s1 = inlined_call_operand.vmem [shape: bf16[72,128], index: 1, kind: input, shape index: {}]
  %s2 = inlined_call_operand.vmem [shape: f32[128,128], index: 2, kind: output, shape index: {0}]
  %s3 = inlined_call_operand.vmem [shape: f32[8,128], index: 3, kind: output, shape index: {1}]
  %s4 = inlined_call_operand.vmem [shape: f32[8,128], index: 4, kind: output, shape index: {2}]
  %5 = xla_tuple %s2, %s3, %s4
  %s6 = sld [smem:[#allocation0]]
  $region34: #{residual_block_base_forward.10} parent=0
    _
  %s8 = ssub.s32 1, %s6
  %s9 = scalar_select 0, %s8, %s6
  // Predicated region
  $region2: #{residual_block_base_forward.10} parent=0 // pred_check
    _
  $region3: #{residual_block_base_forward.10} parent=0 // pred_check_branch
    %11 = sbr.rel (0) target = $region5
  $region4: #{residual_block_base_forward.10} parent=0 // pred_region
    _
  $region5: #{residual_block_base_forward.10} parent=0 // pred_fallthru
    _
  // Predicated region
  $region6: #{residual_block_base_forward.10} parent=0 // pred_check
    _
  $region7: #{residual_block_base_forward.10} parent=0 // pred_check_branch
    %13 = sbr.rel (0) target = $region9
  $region8: #{residual_block_base_forward.10} parent=0 // pred_region
    _
  $region9: #{residual_block_base_forward.10} parent=0 // pred_fallthru
    _
  %v15 = vld [vmem:[%s0] sm:$0xf]
  %v16 = vld [vmem:[%s0 + $0x4] sm:$0xf]
  %v17 = vld [vmem:[%s0 + $0x8] sm:$0xf]
  %v18 = vld [vmem:[%s0 + $0xc] sm:$0xf]
  %v19 = vld [vmem:[%s0 + $0x10] sm:$0xf]
  %v20 = vld [vmem:[%s0 + $0x14] sm:$0xf]
  %v21 = vld [vmem:[%s0 + $0x18] sm:$0xf]
  %v22 = vld [vmem:[%s0 + $0x1c] sm:$0xf]
  %v23 = vld [vmem:[%s0 + $0x20] sm:$0xf]
  %v24 = vld [vmem:[%s0 + $0x24] sm:$0xf]
  %v25 = vld [vmem:[%s0 + $0x28] sm:$0xf]
  %v26 = vld [vmem:[%s0 + $0x2c] sm:$0xf]
  %v27 = vld [vmem:[%s0 + $0x30] sm:$0xf]
  %v28 = vld [vmem:[%s0 + $0x34] sm:$0xf]
  %v29 = vld [vmem:[%s0 + $0x38] sm:$0xf]
  %v30 = vld [vmem:[%s0 + $0x3c] sm:$0xf]
  %v31 = vld [vmem:[%s1] sm:$0xf]
  %v32 = vld [vmem:[%s1 + $0x4] sm:$0xf]
  %v33 = vld [vmem:[%s1 + $0x8] sm:$0xf]
  %v34 = vld [vmem:[%s1 + $0xc] sm:$0xf]
  %v35 = vld [vmem:[%s1 + $0x10] sm:$0xf]
  %v36 = vld [vmem:[%s1 + $0x14] sm:$0xf]
  %v37 = vld [vmem:[%s1 + $0x18] sm:$0xf]
  %v38 = vld [vmem:[%s1 + $0x1c] sm:$0xf]
  %v39 = vld [vmem:[%s1 + $0x20] sm:$0xf]
  %v56 = vunpack.c.l.b16 %v15
  %v57 = vunpack.c.l.b16 %v16
  %v58 = vunpack.c.l.b16 %v17
  %v59 = vunpack.c.l.b16 %v18
  %v60 = vunpack.c.l.b16 %v19
  %v61 = vunpack.c.l.b16 %v20
  %v62 = vunpack.c.l.b16 %v21
  %v63 = vunpack.c.l.b16 %v22
  %v64 = vunpack.c.l.b16 %v23
  %v65 = vunpack.c.l.b16 %v24
  %v66 = vunpack.c.l.b16 %v25
  %v67 = vunpack.c.l.b16 %v26
  %v68 = vunpack.c.l.b16 %v27
  %v69 = vunpack.c.l.b16 %v28
  %v70 = vunpack.c.l.b16 %v29
  %v71 = vunpack.c.l.b16 %v30
  %v72 = vpack.c.b16 %v57, %v56
  %v73 = vpack.c.b16 %v59, %v58
  %v74 = vpack.c.b16 %v61, %v60
  %v75 = vpack.c.b16 %v63, %v62
  %v76 = vpack.c.b16 %v65, %v64
  %v77 = vpack.c.b16 %v67, %v66
  %v78 = vpack.c.b16 %v69, %v68
  %v79 = vpack.c.b16 %v71, %v70
  %v89 = vunpack.c.l.b16 %v31
  %v90 = vunpack.c.l.b16 %v32
  %v91 = vunpack.c.l.b16 %v33
  %v92 = vunpack.c.l.b16 %v34
  %v93 = vunpack.c.l.b16 %v35
  %v94 = vunpack.c.l.b16 %v36
  %v95 = vunpack.c.l.b16 %v37
  %v96 = vunpack.c.l.b16 %v38
  %v97 = vunpack.c.l.b16 %v39
  %v98 = vpack.c.b16 %v90, %v89
  %v99 = vpack.c.b16 %v92, %v91
  %v100 = vpack.c.b16 %v94, %v93
  %v101 = vpack.c.b16 %v96, %v95
  %v102 = vpack.c.b16 %v97, %v97
  %vm107 = vcmask 588800
  %v109 = vsel %vm107, %v72, 0
  %v112 = vsel %vm107, %v73, 0
  %v115 = vsel %vm107, %v74, 0
  %v118 = vsel %vm107, %v75, 0
  %v121 = vsel %vm107, %v76, 0
  %v124 = vsel %vm107, %v77, 0
  %v127 = vsel %vm107, %v78, 0
  %v130 = vsel %vm107, %v79, 0
  %vm132 = vcmask 1043456
  %v134 = vsel %vm132, %v102, 0
  %136 = vmatprep.subr.bf16.mxu0 0
  %137 = vmatpush1.bf16.msra.mxu0 %v98
  %138 = vmatprep.subr.bf16.mxu0 0
  %139 = vmatpush1.bf16.msra.mxu0 %v99
  %140 = vmatprep.subr.bf16.mxu0 0
  %141 = vmatpush1.bf16.msra.mxu0 %v100
  %142 = vmatprep.subr.bf16.mxu0 0
  %143 = vmatpush1.bf16.msra.mxu0 %v101
  %144 = vmatprep.subr.bf16.mxu0 0
  %145 = vmatpush1.bf16.msra.mxu0 %v134
  %146 = vmatprep.subr.bf16.mxu0 0
  %147 = vmatpush1.bf16.msra.mxu0 0
  %148 = vmatprep.subr.bf16.mxu0 0
  %149 = vmatpush1.bf16.msra.mxu0 0
  %150 = vmatprep.subr.bf16.mxu0 0
  %151 = vmatpush1.bf16.msra.mxu0 0
  %152 = vmatprep.subr.bf16.mxu0 0
  %153 = vmatpush1.bf16.msra.mxu0 0
  %154 = vmatprep.subr.bf16.mxu0 0
  %155 = vmatpush1.bf16.msra.mxu0 0
  %156 = vmatprep.subr.bf16.mxu0 0
  %157 = vmatpush1.bf16.msra.mxu0 0
  %158 = vmatprep.subr.bf16.mxu0 0
  %159 = vmatpush1.bf16.msra.mxu0 0
  %160 = vmatprep.subr.bf16.mxu0 0
  %161 = vmatpush1.bf16.msra.mxu0 0
  %162 = vmatprep.subr.bf16.mxu0 0
  %163 = vmatpush1.bf16.msra.mxu0 0
  %164 = vmatprep.subr.bf16.mxu0 0
  %165 = vmatpush1.bf16.msra.mxu0 0
  %166 = vmatprep.subr.bf16.mxu0 0
  %167 = vmatpush1.bf16.msra.mxu0 0
  %168 = vmatprep.mubr.bf16.mxu0 0
  %169 = vmatmul.mubr.bf16.gmra.mrb[0].mxu0 %v109
  %v170 = vpop.f32.mrb[0].mxu0
  %v171 = vadd.f32 0.0, %v170
  %v172 = vpop.f32.mrb[0].mxu0
  %v173 = vpop.f32.mrb[0].mxu0
  %v174 = vadd.f32 0.0, %v173
  %v175 = vpop.f32.mrb[0].mxu0
  %176 = vmatprep.mubr.bf16.mxu0 0
  %177 = vmatmul.mubr.bf16.gmra.mrb[0].mxu0 %v112
  %v178 = vpop.f32.mrb[0].mxu0
  %v179 = vadd.f32 0.0, %v178
  %v180 = vpop.f32.mrb[0].mxu0
  %v181 = vpop.f32.mrb[0].mxu0
  %v182 = vadd.f32 0.0, %v181
  %v183 = vpop.f32.mrb[0].mxu0
  %184 = vmatprep.mubr.bf16.mxu0 0
  %185 = vmatmul.mubr.bf16.gmra.mrb[0].mxu0 %v115
  %v186 = vpop.f32.mrb[0].mxu0
  %v187 = vadd.f32 0.0, %v186
  %v188 = vpop.f32.mrb[0].mxu0
  %v189 = vpop.f32.mrb[0].mxu0
  %v190 = vadd.f32 0.0, %v189
  %v191 = vpop.f32.mrb[0].mxu0
  %192 = vmatprep.mubr.bf16.mxu0 0
  %193 = vmatmul.mubr.bf16.gmra.mrb[0].mxu0 %v118
  %v194 = vpop.f32.mrb[0].mxu0
  %v195 = vadd.f32 0.0, %v194
  %v196 = vpop.f32.mrb[0].mxu0
  %v197 = vpop.f32.mrb[0].mxu0
  %v198 = vadd.f32 0.0, %v197
  %v199 = vpop.f32.mrb[0].mxu0
  %200 = vmatprep.mubr.bf16.mxu0 0
  %201 = vmatmul.mubr.bf16.gmra.mrb[0].mxu0 %v121
  %v202 = vpop.f32.mrb[0].mxu0
  %v203 = vadd.f32 0.0, %v202
  %v204 = vpop.f32.mrb[0].mxu0
  %v205 = vpop.f32.mrb[0].mxu0
  %v206 = vadd.f32 0.0, %v205
  %v207 = vpop.f32.mrb[0].mxu0
  %208 = vmatprep.mubr.bf16.mxu0 0
  %209 = vmatmul.mubr.bf16.gmra.mrb[0].mxu0 %v124
  %v210 = vpop.f32.mrb[0].mxu0
  %v211 = vadd.f32 0.0, %v210
  %v212 = vpop.f32.mrb[0].mxu0
  %v213 = vpop.f32.mrb[0].mxu0
  %v214 = vadd.f32 0.0, %v213
  %v215 = vpop.f32.mrb[0].mxu0
  %216 = vmatprep.mubr.bf16.mxu0 0
  %217 = vmatmul.mubr.bf16.gmra.mrb[0].mxu0 %v127
  %v218 = vpop.f32.mrb[0].mxu0
  %v219 = vadd.f32 0.0, %v218
  %v220 = vpop.f32.mrb[0].mxu0
  %v221 = vpop.f32.mrb[0].mxu0
  %v222 = vadd.f32 0.0, %v221
  %v223 = vpop.f32.mrb[0].mxu0
  %224 = vmatprep.mubr.bf16.mxu0 0
  %225 = vmatmul.mubr.bf16.gmra.mrb[0].mxu0 %v130
  %v226 = vpop.f32.mrb[0].mxu0
  %v227 = vadd.f32 0.0, %v226
  %v228 = vpop.f32.mrb[0].mxu0
  %v229 = vpop.f32.mrb[0].mxu0
  %v230 = vadd.f32 0.0, %v229
  %v231 = vpop.f32.mrb[0].mxu0
  %232 = vdwg.mxu0
  %233 = vst [vmem:[%s2] sm:$0xff] %v171
  %234 = vst [vmem:[%s2 + $0x8] sm:$0xff] %v174
  %235 = vst [vmem:[%s2 + $0x10] sm:$0xff] %v179
  %236 = vst [vmem:[%s2 + $0x18] sm:$0xff] %v182
  %237 = vst [vmem:[%s2 + $0x20] sm:$0xff] %v187
  %238 = vst [vmem:[%s2 + $0x28] sm:$0xff] %v190
  %239 = vst [vmem:[%s2 + $0x30] sm:$0xff] %v195
  %240 = vst [vmem:[%s2 + $0x38] sm:$0xff] %v198
  %241 = vst [vmem:[%s2 + $0x40] sm:$0xff] %v203
  %242 = vst [vmem:[%s2 + $0x48] sm:$0xff] %v206
  %243 = vst [vmem:[%s2 + $0x50] sm:$0xff] %v211
  %244 = vst [vmem:[%s2 + $0x58] sm:$0xff] %v214
  %245 = vst [vmem:[%s2 + $0x60] sm:$0xff] %v219
  %246 = vst [vmem:[%s2 + $0x68] sm:$0xff] %v222
  %247 = vst [vmem:[%s2 + $0x70] sm:$0xff] %v227
  %248 = vst [vmem:[%s2 + $0x78] sm:$0xff] %v230
  %v249 = vadd.f32 %v171, %v174
  %v250 = vadd.f32 %v249, %v179
  %v251 = vadd.f32 %v250, %v182
  %v252 = vadd.f32 %v251, %v187
  %v253 = vadd.f32 %v252, %v190
  %v254 = vadd.f32 %v253, %v195
  %v255 = vadd.f32 %v254, %v198
  %v256 = vadd.f32 %v255, %v203
  %v257 = vadd.f32 %v256, %v206
  %v258 = vadd.f32 %v257, %v211
  %v259 = vadd.f32 %v258, %v214
  %v260 = vadd.f32 %v259, %v219
  %v261 = vadd.f32 %v260, %v222
  %v262 = vadd.f32 %v261, %v227
  %v263 = vadd.f32 %v262, %v230
  %v264 = vrot.slane %v263, 4
  %v265 = vadd.f32 %v263, %v264
  %v266 = vrot.slane %v265, 2
  %v267 = vadd.f32 %v265, %v266
  %v268 = vrot.slane %v267, 1
  %v269 = vadd.f32 %v267, %v268
  %v270 = vmul.f32 %v171, %v171
  %v271 = vmul.f32 %v174, %v174
  %v272 = vmul.f32 %v179, %v179
  %v273 = vmul.f32 %v182, %v182
  %v274 = vmul.f32 %v187, %v187
  %v275 = vmul.f32 %v190, %v190
  %v276 = vmul.f32 %v195, %v195
  %v277 = vmul.f32 %v198, %v198
  %v278 = vmul.f32 %v203, %v203
  %v279 = vmul.f32 %v206, %v206
  %v280 = vmul.f32 %v211, %v211
  %v281 = vmul.f32 %v214, %v214
  %v282 = vmul.f32 %v219, %v219
  %v283 = vmul.f32 %v222, %v222
  %v284 = vmul.f32 %v227, %v227
  %v285 = vmul.f32 %v230, %v230
  %v286 = vadd.f32 %v270, %v271
  %v287 = vadd.f32 %v286, %v272
  %v288 = vadd.f32 %v287, %v273
  %v289 = vadd.f32 %v288, %v274
  %v290 = vadd.f32 %v289, %v275
  %v291 = vadd.f32 %v290, %v276
  %v292 = vadd.f32 %v291, %v277
  %v293 = vadd.f32 %v292, %v278
  %v294 = vadd.f32 %v293, %v279
  %v295 = vadd.f32 %v294, %v280
  %v296 = vadd.f32 %v295, %v281
  %v297 = vadd.f32 %v296, %v282
  %v298 = vadd.f32 %v297, %v283
  %v299 = vadd.f32 %v298, %v284
  %v300 = vadd.f32 %v299, %v285
  %v301 = vrot.slane %v300, 4
  %v302 = vadd.f32 %v300, %v301
  %v303 = vrot.slane %v302, 2
  %v304 = vadd.f32 %v302, %v303
  %v305 = vrot.slane %v304, 1
  %v306 = vadd.f32 %v304, %v305
  %307 = vst [vmem:[%s3] sm:$0xff] %v269
  %308 = vst [vmem:[%s4] sm:$0xff] %v306
  // Predicated region
  $region10: #{residual_block_base_forward.10} parent=0 // pred_check
    _
  $region11: #{residual_block_base_forward.10} parent=0 // pred_check_branch
    %310 = sbr.rel (0) target = $region13
  $region12: #{residual_block_base_forward.10} parent=0 // pred_region
    _
  $region13: #{residual_block_base_forward.10} parent=0 // pred_fallthru
    _
  // Predicated region
  $region14: #{residual_block_base_forward.10} parent=0 // pred_check
    _
  $region15: #{residual_block_base_forward.10} parent=0 // pred_check_branch
    %312 = sbr.rel (0) target = $region17
  $region16: #{residual_block_base_forward.10} parent=0 // pred_region
    _
  $region17: #{residual_block_base_forward.10} parent=0 // pred_fallthru
    _
  // Predicated region
  $region18: #{residual_block_base_forward.10} parent=0 // pred_check
    _
  $region19: #{residual_block_base_forward.10} parent=0 // pred_check_branch
    %314 = sbr.rel (0) target = $region21
  $region20: #{residual_block_base_forward.10} parent=0 // pred_region
    _
  $region21: #{residual_block_base_forward.10} parent=0 // pred_fallthru
    _
  // Predicated region
  $region22: #{residual_block_base_forward.10} parent=0 // pred_check
    _
  $region23: #{residual_block_base_forward.10} parent=0 // pred_check_branch
    %316 = sbr.rel (0) target = $region25
  $region24: #{residual_block_base_forward.10} parent=0 // pred_region
    _
  $region25: #{residual_block_base_forward.10} parent=0 // pred_fallthru
    _
  // Predicated region
  $region26: #{residual_block_base_forward.10} parent=0 // pred_check
    _
  $region27: #{residual_block_base_forward.10} parent=0 // pred_check_branch
    %318 = sbr.rel (0) target = $region29
  $region28: #{residual_block_base_forward.10} parent=0 // pred_region
    _
  $region29: #{residual_block_base_forward.10} parent=0 // pred_fallthru
    _
  // Predicated region
  $region30: #{residual_block_base_forward.10} parent=0 // pred_check
    _
  $region31: #{residual_block_base_forward.10} parent=0 // pred_check_branch
    %320 = sbr.rel (0) target = $region33
  $region32: #{residual_block_base_forward.10} parent=0 // pred_region
    _
  $region33: #{residual_block_base_forward.10} parent=0 // pred_fallthru
    _

// kernel: residual_block_base_forward.9
$region0: #{residual_block_base_forward.9}
  #allocation0 [shape = 'u32[]', space=smem, size = 0x4, offset = 0x4, fixed_abs, tag = 'smem constant byte address 0x4 - core index']
  #allocation1 [shape = 'u32[144,128]{1,0:T(1,128)}', space=vmem, size = 0x12000, scoped, tag = 'internal scratch']
  %s0 = inlined_call_operand.vmem [shape: f32[128,128], index: 0, kind: input, shape index: {}]
  %s1 = inlined_call_operand.vmem [shape: f32[1,128], index: 1, kind: input, shape index: {}]
  %s2 = inlined_call_operand.vmem [shape: f32[1,128], index: 2, kind: input, shape index: {}]
  %s3 = inlined_call_operand.vmem [shape: f32[128,128], index: 3, kind: output, shape index: {}]
  %s4 = sld [smem:[#allocation0]]
  $region22: #{residual_block_base_forward.9} parent=0
    _
  %s6 = ssub.s32 1, %s4
  %s7 = scalar_select 0, %s6, %s4
  // Predicated region
  $region2: #{residual_block_base_forward.9} parent=0 // pred_check
    _
  $region3: #{residual_block_base_forward.9} parent=0 // pred_check_branch
    %9 = sbr.rel (0) target = $region5
  $region4: #{residual_block_base_forward.9} parent=0 // pred_region
    _
  $region5: #{residual_block_base_forward.9} parent=0 // pred_fallthru
    _
  // Predicated region
  $region6: #{residual_block_base_forward.9} parent=0 // pred_check
    _
  $region7: #{residual_block_base_forward.9} parent=0 // pred_check_branch
    %11 = sbr.rel (0) target = $region9
  $region8: #{residual_block_base_forward.9} parent=0 // pred_region
    _
  $region9: #{residual_block_base_forward.9} parent=0 // pred_fallthru
    _
  // Predicated region
  $region10: #{residual_block_base_forward.9} parent=0 // pred_check
    _
  $region11: #{residual_block_base_forward.9} parent=0 // pred_check_branch
    %13 = sbr.rel (0) target = $region13
  $region12: #{residual_block_base_forward.9} parent=0 // pred_region
    _
  $region13: #{residual_block_base_forward.9} parent=0 // pred_fallthru
    _
  %v14 = vld [vmem:[%s0] sm:$0xff]
  %v15 = vld [vmem:[%s0 + $0x8] sm:$0xff]
  %v16 = vld [vmem:[%s0 + $0x10] sm:$0xff]
  %v17 = vld [vmem:[%s0 + $0x18] sm:$0xff]
  %v18 = vld [vmem:[%s0 + $0x20] sm:$0xff]
  %v19 = vld [vmem:[%s0 + $0x28] sm:$0xff]
  %v20 = vld [vmem:[%s0 + $0x30] sm:$0xff]
  %v21 = vld [vmem:[%s0 + $0x38] sm:$0xff]
  %v22 = vld [vmem:[%s0 + $0x40] sm:$0xff]
  %v23 = vld [vmem:[%s0 + $0x48] sm:$0xff]
  %v24 = vld [vmem:[%s0 + $0x50] sm:$0xff]
  %v25 = vld [vmem:[%s0 + $0x58] sm:$0xff]
  %v26 = vld [vmem:[%s0 + $0x60] sm:$0xff]
  %v27 = vld [vmem:[%s0 + $0x68] sm:$0xff]
  %v28 = vld [vmem:[%s0 + $0x70] sm:$0xff]
  %v29 = vld [vmem:[%s0 + $0x78] sm:$0xff]
  %v30 = vld [vmem:[%s1] sm:$0x1]
  %v32 = vlaneseq
  %v33 = vshrl.u32 %v32, 7
  %v34 = vsub.s32 0, %v33
  %v35 = vrot.slane %v30, %v34
  %v37 = vmul.f32 %v14, %v35
  %v38 = vmul.f32 %v15, %v35
  %v39 = vmul.f32 %v16, %v35
  %v40 = vmul.f32 %v17, %v35
  %v41 = vmul.f32 %v18, %v35
  %v42 = vmul.f32 %v19, %v35
  %v43 = vmul.f32 %v20, %v35
  %v44 = vmul.f32 %v21, %v35
  %v45 = vmul.f32 %v22, %v35
  %v46 = vmul.f32 %v23, %v35
  %v47 = vmul.f32 %v24, %v35
  %v48 = vmul.f32 %v25, %v35
  %v49 = vmul.f32 %v26, %v35
  %v50 = vmul.f32 %v27, %v35
  %v51 = vmul.f32 %v28, %v35
  %v52 = vmul.f32 %v29, %v35
  %v53 = vld [vmem:[%s2] sm:$0x1]
  %v55 = vlaneseq
  %v56 = vshrl.u32 %v55, 7
  %v57 = vsub.s32 0, %v56
  %v58 = vrot.slane %v53, %v57
  %v60 = vadd.f32 %v37, %v58
  %v61 = vadd.f32 %v38, %v58
  %v62 = vadd.f32 %v39, %v58
  %v63 = vadd.f32 %v40, %v58
  %v64 = vadd.f32 %v41, %v58
  %v65 = vadd.f32 %v42, %v58
  %v66 = vadd.f32 %v43, %v58
  %v67 = vadd.f32 %v44, %v58
  %v68 = vadd.f32 %v45, %v58
  %v69 = vadd.f32 %v46, %v58
  %v70 = vadd.f32 %v47, %v58
  %v71 = vadd.f32 %v48, %v58
  %v72 = vadd.f32 %v49, %v58
  %v73 = vadd.f32 %v50, %v58
  %v74 = vadd.f32 %v51, %v58
  %v75 = vadd.f32 %v52, %v58
  %76 = vst [vmem:[%s3] sm:$0xff] %v60
  %77 = vst [vmem:[%s3 + $0x8] sm:$0xff] %v61
  %78 = vst [vmem:[%s3 + $0x10] sm:$0xff] %v62
  %79 = vst [vmem:[%s3 + $0x18] sm:$0xff] %v63
  %80 = vst [vmem:[%s3 + $0x20] sm:$0xff] %v64
  %81 = vst [vmem:[%s3 + $0x28] sm:$0xff] %v65
  %82 = vst [vmem:[%s3 + $0x30] sm:$0xff] %v66
  %83 = vst [vmem:[%s3 + $0x38] sm:$0xff] %v67
  %84 = vst [vmem:[%s3 + $0x40] sm:$0xff] %v68
  %85 = vst [vmem:[%s3 + $0x48] sm:$0xff] %v69
  %86 = vst [vmem:[%s3 + $0x50] sm:$0xff] %v70
  %87 = vst [vmem:[%s3 + $0x58] sm:$0xff] %v71
  %88 = vst [vmem:[%s3 + $0x60] sm:$0xff] %v72
  %89 = vst [vmem:[%s3 + $0x68] sm:$0xff] %v73
  %90 = vst [vmem:[%s3 + $0x70] sm:$0xff] %v74
  %91 = vst [vmem:[%s3 + $0x78] sm:$0xff] %v75
  // Predicated region
  $region14: #{residual_block_base_forward.9} parent=0 // pred_check
    _
  $region15: #{residual_block_base_forward.9} parent=0 // pred_check_branch
    %93 = sbr.rel (0) target = $region17
  $region16: #{residual_block_base_forward.9} parent=0 // pred_region
    _
  $region17: #{residual_block_base_forward.9} parent=0 // pred_fallthru
    _
  // Predicated region
  $region18: #{residual_block_base_forward.9} parent=0 // pred_check
    _
  $region19: #{residual_block_base_forward.9} parent=0 // pred_check_branch
    %95 = sbr.rel (0) target = $region21
  $region20: #{residual_block_base_forward.9} parent=0 // pred_region
    _
  $region21: #{residual_block_base_forward.9} parent=0 // pred_fallthru
    _

// kernel: residual_block_base_forward.8
$region0: #{residual_block_base_forward.8}
  #allocation0 [shape = 'u32[]', space=smem, size = 0x4, offset = 0x4, fixed_abs, tag = 'smem constant byte address 0x4 - core index']
  #allocation1 [shape = 'u32[144,128]{1,0:T(1,128)}', space=vmem, size = 0x12000, scoped, tag = 'internal scratch']
  %s0 = inlined_call_operand.vmem [shape: bf16[128,4], index: 0, kind: input, shape index: {}]
  %s1 = inlined_call_operand.vmem [shape: bf16[4,128], index: 1, kind: input, shape index: {}]
  %s2 = inlined_call_operand.vmem [shape: f32[128,128], index: 2, kind: output, shape index: {0}]
  %s3 = inlined_call_operand.vmem [shape: f32[8,128], index: 3, kind: output, shape index: {1}]
  %s4 = inlined_call_operand.vmem [shape: f32[8,128], index: 4, kind: output, shape index: {2}]
  %5 = xla_tuple %s2, %s3, %s4
  %s6 = sld [smem:[#allocation0]]
  $region34: #{residual_block_base_forward.8} parent=0
    _
  %s8 = ssub.s32 1, %s6
  %s9 = scalar_select 0, %s8, %s6
  // Predicated region
  $region2: #{residual_block_base_forward.8} parent=0 // pred_check
    _
  $region3: #{residual_block_base_forward.8} parent=0 // pred_check_branch
    %11 = sbr.rel (0) target = $region5
  $region4: #{residual_block_base_forward.8} parent=0 // pred_region
    _
  $region5: #{residual_block_base_forward.8} parent=0 // pred_fallthru
    _
  // Predicated region
  $region6: #{residual_block_base_forward.8} parent=0 // pred_check
    _
  $region7: #{residual_block_base_forward.8} parent=0 // pred_check_branch
    %13 = sbr.rel (0) target = $region9
  $region8: #{residual_block_base_forward.8} parent=0 // pred_region
    _
  $region9: #{residual_block_base_forward.8} parent=0 // pred_fallthru
    _
  %v15 = vld [vmem:[%s0] sm:$0xf]
  %v16 = vld [vmem:[%s0 + $0x4] sm:$0xf]
  %v17 = vld [vmem:[%s0 + $0x8] sm:$0xf]
  %v18 = vld [vmem:[%s0 + $0xc] sm:$0xf]
  %v19 = vld [vmem:[%s0 + $0x10] sm:$0xf]
  %v20 = vld [vmem:[%s0 + $0x14] sm:$0xf]
  %v21 = vld [vmem:[%s0 + $0x18] sm:$0xf]
  %v22 = vld [vmem:[%s0 + $0x1c] sm:$0xf]
  %v23 = vld [vmem:[%s0 + $0x20] sm:$0xf]
  %v24 = vld [vmem:[%s0 + $0x24] sm:$0xf]
  %v25 = vld [vmem:[%s0 + $0x28] sm:$0xf]
  %v26 = vld [vmem:[%s0 + $0x2c] sm:$0xf]
  %v27 = vld [vmem:[%s0 + $0x30] sm:$0xf]
  %v28 = vld [vmem:[%s0 + $0x34] sm:$0xf]
  %v29 = vld [vmem:[%s0 + $0x38] sm:$0xf]
  %v30 = vld [vmem:[%s0 + $0x3c] sm:$0xf]
  %v31 = vld [vmem:[%s1] sm:$0x3]
  %v48 = vunpack.c.l.b16 %v15
  %v49 = vunpack.c.l.b16 %v16
  %v50 = vunpack.c.l.b16 %v17
  %v51 = vunpack.c.l.b16 %v18
  %v52 = vunpack.c.l.b16 %v19
  %v53 = vunpack.c.l.b16 %v20
  %v54 = vunpack.c.l.b16 %v21
  %v55 = vunpack.c.l.b16 %v22
  %v56 = vunpack.c.l.b16 %v23
  %v57 = vunpack.c.l.b16 %v24
  %v58 = vunpack.c.l.b16 %v25
  %v59 = vunpack.c.l.b16 %v26
  %v60 = vunpack.c.l.b16 %v27
  %v61 = vunpack.c.l.b16 %v28
  %v62 = vunpack.c.l.b16 %v29
  %v63 = vunpack.c.l.b16 %v30
  %v64 = vpack.c.b16 %v49, %v48
  %v65 = vpack.c.b16 %v51, %v50
  %v66 = vpack.c.b16 %v53, %v52
  %v67 = vpack.c.b16 %v55, %v54
  %v68 = vpack.c.b16 %v57, %v56
  %v69 = vpack.c.b16 %v59, %v58
  %v70 = vpack.c.b16 %v61, %v60
  %v71 = vpack.c.b16 %v63, %v62
  %vm72 = vcmask 31744
  %v74 = vsel %vm72, %v64, 0
  %v77 = vsel %vm72, %v65, 0
  %v80 = vsel %vm72, %v66, 0
  %v83 = vsel %vm72, %v67, 0
  %v86 = vsel %vm72, %v68, 0
  %v89 = vsel %vm72, %v69, 0
  %v92 = vsel %vm72, %v70, 0
  %v95 = vsel %vm72, %v71, 0
  %vm97 = vcmask 1041408
  %v99 = vsel %vm97, %v31, 0
  %101 = vmatprep.subr.bf16.mxu0 0
  %102 = vmatpush1.bf16.msra.mxu0 %v99
  %103 = vmatprep.subr.bf16.mxu0 0
  %104 = vmatpush1.bf16.msra.mxu0 0
  %105 = vmatprep.subr.bf16.mxu0 0
  %106 = vmatpush1.bf16.msra.mxu0 0
  %107 = vmatprep.subr.bf16.mxu0 0
  %108 = vmatpush1.bf16.msra.mxu0 0
  %109 = vmatprep.subr.bf16.mxu0 0
  %110 = vmatpush1.bf16.msra.mxu0 0
  %111 = vmatprep.subr.bf16.mxu0 0
  %112 = vmatpush1.bf16.msra.mxu0 0
  %113 = vmatprep.subr.bf16.mxu0 0
  %114 = vmatpush1.bf16.msra.mxu0 0
  %115 = vmatprep.subr.bf16.mxu0 0
  %116 = vmatpush1.bf16.msra.mxu0 0
  %117 = vmatprep.subr.bf16.mxu0 0
  %118 = vmatpush1.bf16.msra.mxu0 0
  %119 = vmatprep.subr.bf16.mxu0 0
  %120 = vmatpush1.bf16.msra.mxu0 0
  %121 = vmatprep.subr.bf16.mxu0 0
  %122 = vmatpush1.bf16.msra.mxu0 0
  %123 = vmatprep.subr.bf16.mxu0 0
  %124 = vmatpush1.bf16.msra.mxu0 0
  %125 = vmatprep.subr.bf16.mxu0 0
  %126 = vmatpush1.bf16.msra.mxu0 0
  %127 = vmatprep.subr.bf16.mxu0 0
  %128 = vmatpush1.bf16.msra.mxu0 0
  %129 = vmatprep.subr.bf16.mxu0 0
  %130 = vmatpush1.bf16.msra.mxu0 0
  %131 = vmatprep.subr.bf16.mxu0 0
  %132 = vmatpush1.bf16.msra.mxu0 0
  %133 = vmatprep.mubr.bf16.mxu0 0
  %134 = vmatmul.mubr.bf16.gmra.mrb[0].mxu0 %v74
  %v135 = vpop.f32.mrb[0].mxu0
  %v136 = vadd.f32 0.0, %v135
  %v137 = vpop.f32.mrb[0].mxu0
  %v138 = vpop.f32.mrb[0].mxu0
  %v139 = vadd.f32 0.0, %v138
  %v140 = vpop.f32.mrb[0].mxu0
  %141 = vmatprep.mubr.bf16.mxu0 0
  %142 = vmatmul.mubr.bf16.gmra.mrb[0].mxu0 %v77
  %v143 = vpop.f32.mrb[0].mxu0
  %v144 = vadd.f32 0.0, %v143
  %v145 = vpop.f32.mrb[0].mxu0
  %v146 = vpop.f32.mrb[0].mxu0
  %v147 = vadd.f32 0.0, %v146
  %v148 = vpop.f32.mrb[0].mxu0
  %149 = vmatprep.mubr.bf16.mxu0 0
  %150 = vmatmul.mubr.bf16.gmra.mrb[0].mxu0 %v80
  %v151 = vpop.f32.mrb[0].mxu0
  %v152 = vadd.f32 0.0, %v151
  %v153 = vpop.f32.mrb[0].mxu0
  %v154 = vpop.f32.mrb[0].mxu0
  %v155 = vadd.f32 0.0, %v154
  %v156 = vpop.f32.mrb[0].mxu0
  %157 = vmatprep.mubr.bf16.mxu0 0
  %158 = vmatmul.mubr.bf16.gmra.mrb[0].mxu0 %v83
  %v159 = vpop.f32.mrb[0].mxu0
  %v160 = vadd.f32 0.0, %v159
  %v161 = vpop.f32.mrb[0].mxu0
  %v162 = vpop.f32.mrb[0].mxu0
  %v163 = vadd.f32 0.0, %v162
  %v164 = vpop.f32.mrb[0].mxu0
  %165 = vmatprep.mubr.bf16.mxu0 0
  %166 = vmatmul.mubr.bf16.gmra.mrb[0].mxu0 %v86
  %v167 = vpop.f32.mrb[0].mxu0
  %v168 = vadd.f32 0.0, %v167
  %v169 = vpop.f32.mrb[0].mxu0
  %v170 = vpop.f32.mrb[0].mxu0
  %v171 = vadd.f32 0.0, %v170
  %v172 = vpop.f32.mrb[0].mxu0
  %173 = vmatprep.mubr.bf16.mxu0 0
  %174 = vmatmul.mubr.bf16.gmra.mrb[0].mxu0 %v89
  %v175 = vpop.f32.mrb[0].mxu0
  %v176 = vadd.f32 0.0, %v175
  %v177 = vpop.f32.mrb[0].mxu0
  %v178 = vpop.f32.mrb[0].mxu0
  %v179 = vadd.f32 0.0, %v178
  %v180 = vpop.f32.mrb[0].mxu0
  %181 = vmatprep.mubr.bf16.mxu0 0
  %182 = vmatmul.mubr.bf16.gmra.mrb[0].mxu0 %v92
  %v183 = vpop.f32.mrb[0].mxu0
  %v184 = vadd.f32 0.0, %v183
  %v185 = vpop.f32.mrb[0].mxu0
  %v186 = vpop.f32.mrb[0].mxu0
  %v187 = vadd.f32 0.0, %v186
  %v188 = vpop.f32.mrb[0].mxu0
  %189 = vmatprep.mubr.bf16.mxu0 0
  %190 = vmatmul.mubr.bf16.gmra.mrb[0].mxu0 %v95
  %v191 = vpop.f32.mrb[0].mxu0
  %v192 = vadd.f32 0.0, %v191
  %v193 = vpop.f32.mrb[0].mxu0
  %v194 = vpop.f32.mrb[0].mxu0
  %v195 = vadd.f32 0.0, %v194
  %v196 = vpop.f32.mrb[0].mxu0
  %197 = vdwg.mxu0
  %198 = vst [vmem:[%s2] sm:$0xff] %v136
  %199 = vst [vmem:[%s2 + $0x8] sm:$0xff] %v139
  %200 = vst [vmem:[%s2 + $0x10] sm:$0xff] %v144
  %201 = vst [vmem:[%s2 + $0x18] sm:$0xff] %v147
  %202 = vst [vmem:[%s2 + $0x20] sm:$0xff] %v152
  %203 = vst [vmem:[%s2 + $0x28] sm:$0xff] %v155
  %204 = vst [vmem:[%s2 + $0x30] sm:$0xff] %v160
  %205 = vst [vmem:[%s2 + $0x38] sm:$0xff] %v163
  %206 = vst [vmem:[%s2 + $0x40] sm:$0xff] %v168
  %207 = vst [vmem:[%s2 + $0x48] sm:$0xff] %v171
  %208 = vst [vmem:[%s2 + $0x50] sm:$0xff] %v176
  %209 = vst [vmem:[%s2 + $0x58] sm:$0xff] %v179
  %210 = vst [vmem:[%s2 + $0x60] sm:$0xff] %v184
  %211 = vst [vmem:[%s2 + $0x68] sm:$0xff] %v187
  %212 = vst [vmem:[%s2 + $0x70] sm:$0xff] %v192
  %213 = vst [vmem:[%s2 + $0x78] sm:$0xff] %v195
  %v214 = vadd.f32 %v136, %v139
  %v215 = vadd.f32 %v214, %v144
  %v216 = vadd.f32 %v215, %v147
  %v217 = vadd.f32 %v216, %v152
  %v218 = vadd.f32 %v217, %v155
  %v219 = vadd.f32 %v218, %v160
  %v220 = vadd.f32 %v219, %v163
  %v221 = vadd.f32 %v220, %v168
  %v222 = vadd.f32 %v221, %v171
  %v223 = vadd.f32 %v222, %v176
  %v224 = vadd.f32 %v223, %v179
  %v225 = vadd.f32 %v224, %v184
  %v226 = vadd.f32 %v225, %v187
  %v227 = vadd.f32 %v226, %v192
  %v228 = vadd.f32 %v227, %v195
  %v229 = vrot.slane %v228, 4
  %v230 = vadd.f32 %v228, %v229
  %v231 = vrot.slane %v230, 2
  %v232 = vadd.f32 %v230, %v231
  %v233 = vrot.slane %v232, 1
  %v234 = vadd.f32 %v232, %v233
  %v235 = vmul.f32 %v136, %v136
  %v236 = vmul.f32 %v139, %v139
  %v237 = vmul.f32 %v144, %v144
  %v238 = vmul.f32 %v147, %v147
  %v239 = vmul.f32 %v152, %v152
  %v240 = vmul.f32 %v155, %v155
  %v241 = vmul.f32 %v160, %v160
  %v242 = vmul.f32 %v163, %v163
  %v243 = vmul.f32 %v168, %v168
  %v244 = vmul.f32 %v171, %v171
  %v245 = vmul.f32 %v176, %v176
  %v246 = vmul.f32 %v179, %v179
  %v247 = vmul.f32 %v184, %v184
  %v248 = vmul.f32 %v187, %v187
  %v249 = vmul.f32 %v192, %v192
  %v250 = vmul.f32 %v195, %v195
  %v251 = vadd.f32 %v235, %v236
  %v252 = vadd.f32 %v251, %v237
  %v253 = vadd.f32 %v252, %v238
  %v254 = vadd.f32 %v253, %v239
  %v255 = vadd.f32 %v254, %v240
  %v256 = vadd.f32 %v255, %v241
  %v257 = vadd.f32 %v256, %v242
  %v258 = vadd.f32 %v257, %v243
  %v259 = vadd.f32 %v258, %v244
  %v260 = vadd.f32 %v259, %v245
  %v261 = vadd.f32 %v260, %v246
  %v262 = vadd.f32 %v261, %v247
  %v263 = vadd.f32 %v262, %v248
  %v264 = vadd.f32 %v263, %v249
  %v265 = vadd.f32 %v264, %v250
  %v266 = vrot.slane %v265, 4
  %v267 = vadd.f32 %v265, %v266
  %v268 = vrot.slane %v267, 2
  %v269 = vadd.f32 %v267, %v268
  %v270 = vrot.slane %v269, 1
  %v271 = vadd.f32 %v269, %v270
  %272 = vst [vmem:[%s3] sm:$0xff] %v234
  %273 = vst [vmem:[%s4] sm:$0xff] %v271
  // Predicated region
  $region10: #{residual_block_base_forward.8} parent=0 // pred_check
    _
  $region11: #{residual_block_base_forward.8} parent=0 // pred_check_branch
    %275 = sbr.rel (0) target = $region13
  $region12: #{residual_block_base_forward.8} parent=0 // pred_region
    _
  $region13: #{residual_block_base_forward.8} parent=0 // pred_fallthru
    _
  // Predicated region
  $region14: #{residual_block_base_forward.8} parent=0 // pred_check
    _
  $region15: #{residual_block_base_forward.8} parent=0 // pred_check_branch
    %277 = sbr.rel (0) target = $region17
  $region16: #{residual_block_base_forward.8} parent=0 // pred_region
    _
  $region17: #{residual_block_base_forward.8} parent=0 // pred_fallthru
    _
  // Predicated region
  $region18: #{residual_block_base_forward.8} parent=0 // pred_check
    _
  $region19: #{residual_block_base_forward.8} parent=0 // pred_check_branch
    %279 = sbr.rel (0) target = $region21
  $region20: #{residual_block_base_forward.8} parent=0 // pred_region
    _
  $region21: #{residual_block_base_forward.8} parent=0 // pred_fallthru
    _
  // Predicated region
  $region22: #{residual_block_base_forward.8} parent=0 // pred_check
    _
  $region23: #{residual_block_base_forward.8} parent=0 // pred_check_branch
    %281 = sbr.rel (0) target = $region25
  $region24: #{residual_block_base_forward.8} parent=0 // pred_region
    _
  $region25: #{residual_block_base_forward.8} parent=0 // pred_fallthru
    _
  // Predicated region
  $region26: #{residual_block_base_forward.8} parent=0 // pred_check
    _
  $region27: #{residual_block_base_forward.8} parent=0 // pred_check_branch
    %283 = sbr.rel (0) target = $region29
  $region28: #{residual_block_base_forward.8} parent=0 // pred_region
    _
  $region29: #{residual_block_base_forward.8} parent=0 // pred_fallthru
    _
  // Predicated region
  $region30: #{residual_block_base_forward.8} parent=0 // pred_check
    _
  $region31: #{residual_block_base_forward.8} parent=0 // pred_check_branch
    %285 = sbr.rel (0) target = $region33
  $region32: #{residual_block_base_forward.8} parent=0 // pred_region
    _
  $region33: #{residual_block_base_forward.8} parent=0 // pred_fallthru
    _

// kernel: residual_block_base_forward.11
$region0: #{residual_block_base_forward.11}
  #allocation0 [shape = 'u32[]', space=smem, size = 0x4, offset = 0x4, fixed_abs, tag = 'smem constant byte address 0x4 - core index']
  #allocation1 [shape = 'u32[144,128]{1,0:T(1,128)}', space=vmem, size = 0x12000, scoped, tag = 'internal scratch']
  %s0 = inlined_call_operand.vmem [shape: f32[128,128], index: 0, kind: input, shape index: {}]
  %s1 = inlined_call_operand.vmem [shape: f32[1,128], index: 1, kind: input, shape index: {}]
  %s2 = inlined_call_operand.vmem [shape: f32[1,128], index: 2, kind: input, shape index: {}]
  %s3 = inlined_call_operand.vmem [shape: f32[128,128], index: 3, kind: input, shape index: {}]
  %s4 = inlined_call_operand.vmem [shape: f32[128,128], index: 4, kind: output, shape index: {}]
  %s5 = sld [smem:[#allocation0]]
  $region26: #{residual_block_base_forward.11} parent=0
    _
  %s7 = ssub.s32 1, %s5
  %s8 = scalar_select 0, %s7, %s5
  // Predicated region
  $region2: #{residual_block_base_forward.11} parent=0 // pred_check
    _
  $region3: #{residual_block_base_forward.11} parent=0 // pred_check_branch
    %10 = sbr.rel (0) target = $region5
  $region4: #{residual_block_base_forward.11} parent=0 // pred_region
    _
  $region5: #{residual_block_base_forward.11} parent=0 // pred_fallthru
    _
  // Predicated region
  $region6: #{residual_block_base_forward.11} parent=0 // pred_check
    _
  $region7: #{residual_block_base_forward.11} parent=0 // pred_check_branch
    %12 = sbr.rel (0) target = $region9
  $region8: #{residual_block_base_forward.11} parent=0 // pred_region
    _
  $region9: #{residual_block_base_forward.11} parent=0 // pred_fallthru
    _
  // Predicated region
  $region10: #{residual_block_base_forward.11} parent=0 // pred_check
    _
  $region11: #{residual_block_base_forward.11} parent=0 // pred_check_branch
    %14 = sbr.rel (0) target = $region13
  $region12: #{residual_block_base_forward.11} parent=0 // pred_region
    _
  $region13: #{residual_block_base_forward.11} parent=0 // pred_fallthru
    _
  // Predicated region
  $region14: #{residual_block_base_forward.11} parent=0 // pred_check
    _
  $region15: #{residual_block_base_forward.11} parent=0 // pred_check_branch
    %16 = sbr.rel (0) target = $region17
  $region16: #{residual_block_base_forward.11} parent=0 // pred_region
    _
  $region17: #{residual_block_base_forward.11} parent=0 // pred_fallthru
    _
  %v17 = vld [vmem:[%s0] sm:$0xff]
  %v18 = vld [vmem:[%s0 + $0x8] sm:$0xff]
  %v19 = vld [vmem:[%s0 + $0x10] sm:$0xff]
  %v20 = vld [vmem:[%s0 + $0x18] sm:$0xff]
  %v21 = vld [vmem:[%s0 + $0x20] sm:$0xff]
  %v22 = vld [vmem:[%s0 + $0x28] sm:$0xff]
  %v23 = vld [vmem:[%s0 + $0x30] sm:$0xff]
  %v24 = vld [vmem:[%s0 + $0x38] sm:$0xff]
  %v25 = vld [vmem:[%s0 + $0x40] sm:$0xff]
  %v26 = vld [vmem:[%s0 + $0x48] sm:$0xff]
  %v27 = vld [vmem:[%s0 + $0x50] sm:$0xff]
  %v28 = vld [vmem:[%s0 + $0x58] sm:$0xff]
  %v29 = vld [vmem:[%s0 + $0x60] sm:$0xff]
  %v30 = vld [vmem:[%s0 + $0x68] sm:$0xff]
  %v31 = vld [vmem:[%s0 + $0x70] sm:$0xff]
  %v32 = vld [vmem:[%s0 + $0x78] sm:$0xff]
  %v33 = vld [vmem:[%s1] sm:$0x1]
  %v35 = vlaneseq
  %v36 = vshrl.u32 %v35, 7
  %v37 = vsub.s32 0, %v36
  %v38 = vrot.slane %v33, %v37
  %v40 = vmul.f32 %v17, %v38
  %v41 = vmul.f32 %v18, %v38
  %v42 = vmul.f32 %v19, %v38
  %v43 = vmul.f32 %v20, %v38
  %v44 = vmul.f32 %v21, %v38
  %v45 = vmul.f32 %v22, %v38
  %v46 = vmul.f32 %v23, %v38
  %v47 = vmul.f32 %v24, %v38
  %v48 = vmul.f32 %v25, %v38
  %v49 = vmul.f32 %v26, %v38
  %v50 = vmul.f32 %v27, %v38
  %v51 = vmul.f32 %v28, %v38
  %v52 = vmul.f32 %v29, %v38
  %v53 = vmul.f32 %v30, %v38
  %v54 = vmul.f32 %v31, %v38
  %v55 = vmul.f32 %v32, %v38
  %v56 = vld [vmem:[%s2] sm:$0x1]
  %v58 = vlaneseq
  %v59 = vshrl.u32 %v58, 7
  %v60 = vsub.s32 0, %v59
  %v61 = vrot.slane %v56, %v60
  %v63 = vadd.f32 %v40, %v61
  %v64 = vadd.f32 %v41, %v61
  %v65 = vadd.f32 %v42, %v61
  %v66 = vadd.f32 %v43, %v61
  %v67 = vadd.f32 %v44, %v61
  %v68 = vadd.f32 %v45, %v61
  %v69 = vadd.f32 %v46, %v61
  %v70 = vadd.f32 %v47, %v61
  %v71 = vadd.f32 %v48, %v61
  %v72 = vadd.f32 %v49, %v61
  %v73 = vadd.f32 %v50, %v61
  %v74 = vadd.f32 %v51, %v61
  %v75 = vadd.f32 %v52, %v61
  %v76 = vadd.f32 %v53, %v61
  %v77 = vadd.f32 %v54, %v61
  %v78 = vadd.f32 %v55, %v61
  %v79 = vld [vmem:[%s3] sm:$0xff]
  %v80 = vld [vmem:[%s3 + $0x8] sm:$0xff]
  %v81 = vld [vmem:[%s3 + $0x10] sm:$0xff]
  %v82 = vld [vmem:[%s3 + $0x18] sm:$0xff]
  %v83 = vld [vmem:[%s3 + $0x20] sm:$0xff]
  %v84 = vld [vmem:[%s3 + $0x28] sm:$0xff]
  %v85 = vld [vmem:[%s3 + $0x30] sm:$0xff]
  %v86 = vld [vmem:[%s3 + $0x38] sm:$0xff]
  %v87 = vld [vmem:[%s3 + $0x40] sm:$0xff]
  %v88 = vld [vmem:[%s3 + $0x48] sm:$0xff]
  %v89 = vld [vmem:[%s3 + $0x50] sm:$0xff]
  %v90 = vld [vmem:[%s3 + $0x58] sm:$0xff]
  %v91 = vld [vmem:[%s3 + $0x60] sm:$0xff]
  %v92 = vld [vmem:[%s3 + $0x68] sm:$0xff]
  %v93 = vld [vmem:[%s3 + $0x70] sm:$0xff]
  %v94 = vld [vmem:[%s3 + $0x78] sm:$0xff]
  %v95 = vadd.f32 %v63, %v79
  %v96 = vadd.f32 %v64, %v80
  %v97 = vadd.f32 %v65, %v81
  %v98 = vadd.f32 %v66, %v82
  %v99 = vadd.f32 %v67, %v83
  %v100 = vadd.f32 %v68, %v84
  %v101 = vadd.f32 %v69, %v85
  %v102 = vadd.f32 %v70, %v86
  %v103 = vadd.f32 %v71, %v87
  %v104 = vadd.f32 %v72, %v88
  %v105 = vadd.f32 %v73, %v89
  %v106 = vadd.f32 %v74, %v90
  %v107 = vadd.f32 %v75, %v91
  %v108 = vadd.f32 %v76, %v92
  %v109 = vadd.f32 %v77, %v93
  %v110 = vadd.f32 %v78, %v94
  %v111 = vmax.f32 %v95, 0.0
  %v112 = vmax.f32 %v96, 0.0
  %v113 = vmax.f32 %v97, 0.0
  %v114 = vmax.f32 %v98, 0.0
  %v115 = vmax.f32 %v99, 0.0
  %v116 = vmax.f32 %v100, 0.0
  %v117 = vmax.f32 %v101, 0.0
  %v118 = vmax.f32 %v102, 0.0
  %v119 = vmax.f32 %v103, 0.0
  %v120 = vmax.f32 %v104, 0.0
  %v121 = vmax.f32 %v105, 0.0
  %v122 = vmax.f32 %v106, 0.0
  %v123 = vmax.f32 %v107, 0.0
  %v124 = vmax.f32 %v108, 0.0
  %v125 = vmax.f32 %v109, 0.0
  %v126 = vmax.f32 %v110, 0.0
  %127 = vst [vmem:[%s4] sm:$0xff] %v111
  %128 = vst [vmem:[%s4 + $0x8] sm:$0xff] %v112
  %129 = vst [vmem:[%s4 + $0x10] sm:$0xff] %v113
  %130 = vst [vmem:[%s4 + $0x18] sm:$0xff] %v114
  %131 = vst [vmem:[%s4 + $0x20] sm:$0xff] %v115
  %132 = vst [vmem:[%s4 + $0x28] sm:$0xff] %v116
  %133 = vst [vmem:[%s4 + $0x30] sm:$0xff] %v117
  %134 = vst [vmem:[%s4 + $0x38] sm:$0xff] %v118
  %135 = vst [vmem:[%s4 + $0x40] sm:$0xff] %v119
  %136 = vst [vmem:[%s4 + $0x48] sm:$0xff] %v120
  %137 = vst [vmem:[%s4 + $0x50] sm:$0xff] %v121
  %138 = vst [vmem:[%s4 + $0x58] sm:$0xff] %v122
  %139 = vst [vmem:[%s4 + $0x60] sm:$0xff] %v123
  %140 = vst [vmem:[%s4 + $0x68] sm:$0xff] %v124
  %141 = vst [vmem:[%s4 + $0x70] sm:$0xff] %v125
  %142 = vst [vmem:[%s4 + $0x78] sm:$0xff] %v126
  // Predicated region
  $region18: #{residual_block_base_forward.11} parent=0 // pred_check
    _
  $region19: #{residual_block_base_forward.11} parent=0 // pred_check_branch
    %144 = sbr.rel (0) target = $region21
  $region20: #{residual_block_base_forward.11} parent=0 // pred_region
    _
  $region21: #{residual_block_base_forward.11} parent=0 // pred_fallthru
    _
  // Predicated region
  $region22: #{residual_block_base_forward.11} parent=0 // pred_check
    _
  $region23: #{residual_block_base_forward.11} parent=0 // pred_check_branch
    %146 = sbr.rel (0) target = $region25
  $region24: #{residual_block_base_forward.11} parent=0 // pred_region
    _
  $region25: #{residual_block_base_forward.11} parent=0 // pred_fallthru
    _

</llo_original>
